<compile_context>
chip_gen: v6e
topology: v6e:2x2x1
jax: 0.10.0
libtpu: 0.0.40
codegen_flags: <defaults>
</compile_context>

<pallas_src>
import math
import functools

import jax
import jax.numpy as jnp
from jax.experimental import pallas as pl
from jax.experimental.pallas import tpu as pltpu

F32 = jnp.float32

# ---- module hyperparameters (mirror the PyTorch __init__ / kargs) -----------
INPUT_SIZE = 32          # Encoder input_size (n_observation / n_target dim)
COND_SIZE = 128          # condition_size == point_feat_hidden_dim
OUTPUT_SIZE = 16         # latent output_size
HIDDEN = 64              # kargs['encoder_hidden_layer_size']
N_HIDDEN_LAYERS = 2      # kargs['encoder_hidden_layer_num'] (kernel matches this)
FIX_VAR = 0.3            # std = exp(0.5 * logvar) = exp(log(var)) = var = 0.3
EMB_DIM = 128            # point_type_embedding_dim
PF_DIM = 128             # point_feat_hidden_dim
N_HAND_PTS = 64
N_OBJ_PTS = 32
N_PTS = N_HAND_PTS + N_OBJ_PTS

# ---- packed-slab layout (weight slab rows, all 8-aligned) --------------------
W1A_O = 0        # point-feat layer-1 xyz weight (3 rows used, padded to 8)
PF2_O = 8        # point-feat layer-2 (128,128)
PF3_O = 136      # point-feat layer-3 (128,128)
G1_O = 264       # glb-feat layer-1 (256,128)
G2_O = 520       # glb-feat layer-2 (128,128)
E0X_O = 648      # encoders fc0 x-weight, block-diag (64,128)
E0C_O = 712      # encoders fc0 cond-weight, lane-concat (128,128)
E1X_O = 840      # fc1 x-weight (64,128)
E1R_O = 904      # fc1 r-weight (128,128)
E2X_O = 1032     # fc2 x-weight (64,128)
E2R_O = 1096     # fc2 r-weight (128,128)
EMX_O = 1224     # mu x-weight, lane-padded (64,128; cols 0:32 used)
EMR_O = 1288     # mu r-weight, lane-padded (128,128; cols 0:32 used)
W_ROWS = 1416

# bias-slab rows
B_SEG_HAND, B_SEG_OBJ, B_PF2, B_PF3, B_G1, B_G2, B_E0, B_E1, B_E2, B_MU = range(10)
B_ROWS = 16

# activation slab: rows 0:96 = point cloud (cols 0:3), row 96 = [xo|xt|nz]
ACT_ROWS = 104
XCAT_LO, XCAT_HI = 0, 2 * INPUT_SIZE
NZ_LO, NZ_HI = 2 * INPUT_SIZE, 2 * INPUT_SIZE + OUTPUT_SIZE


# kargs['encoder_activation'] assumed 'elu' (torch default alpha=1)
def _elu(x):
    return jnp.where(x > 0, x, jnp.exp(jnp.minimum(x, 0.0)) - 1.0)


def _mm(a, b):
    return jnp.dot(a, b, preferred_element_type=F32)


# ------------------------------ fused Pallas kernel ---------------------------

def fused_kernel(act_ref, w_ref, b_ref, out_ref):
    # --- point-feature MLP over the stacked (hand | obj) cloud ---------------
    pts = act_ref[0:N_PTS, :]                              # (96,128), cols 0:3 live
    w1a = w_ref[W1A_O:W1A_O + 3, :]                        # (3,128)
    # K=3 layer on the VPU (three broadcast FMAs); type-embedding term is a
    # precomputed per-cloud segment bias (rows 0/1 of the bias slab).
    h = (pts[:, 0:1] * w1a[0:1, :]
         + pts[:, 1:2] * w1a[1:2, :]
         + pts[:, 2:3] * w1a[2:3, :])                      # (96,128)
    h = jnp.concatenate(
        [h[:N_HAND_PTS] + b_ref[B_SEG_HAND:B_SEG_HAND + 1, :],
         h[N_HAND_PTS:] + b_ref[B_SEG_OBJ:B_SEG_OBJ + 1, :]], axis=0)
    h = jnp.maximum(h, 0.0)
    h = jnp.maximum(_mm(h, w_ref[PF2_O:PF3_O, :]) + b_ref[B_PF2:B_PF2 + 1, :], 0.0)
    h = _mm(h, w_ref[PF3_O:G1_O, :]) + b_ref[B_PF3:B_PF3 + 1, :]

    # torch.max(..., dim=0, keepdim=True) per cloud
    hand_feat = jnp.max(h[:N_HAND_PTS], axis=0, keepdims=True)    # (1,128)
    obj_feat = jnp.max(h[N_HAND_PTS:], axis=0, keepdims=True)     # (1,128)

    # --- glb_feat_layer: Linear(256,128) / ReLU / Linear(128,128) ------------
    hov = jnp.concatenate([hand_feat, obj_feat], axis=1)          # (1,256)
    g = jnp.maximum(_mm(hov, w_ref[G1_O:G2_O, :]) + b_ref[B_G1:B_G1 + 1, :], 0.0)
    encoded = _mm(g, w_ref[G2_O:E0X_O, :]) + b_ref[B_G2:B_G2 + 1, :]   # (1,128)

    # --- prior & post Encoder.encode, lane-packed (prior lanes 0:64/0:16,
    #     post lanes 64:128/16:32); ELU, 2 hidden layers, fixed var ----------
    xcat = act_ref[N_PTS:N_PTS + 1, XCAT_LO:XCAT_HI]              # (1,64) [xo|xt]
    nz = act_ref[N_PTS:N_PTS + 1, NZ_LO:NZ_HI]                    # (1,16)

    r = _elu(_mm(xcat, w_ref[E0X_O:E0C_O, :])
             + _mm(encoded, w_ref[E0C_O:E1X_O, :]) + b_ref[B_E0:B_E0 + 1, :])
    r = _elu(_mm(xcat, w_ref[E1X_O:E1R_O, :])
             + _mm(r, w_ref[E1R_O:E2X_O, :]) + b_ref[B_E1:B_E1 + 1, :])
    r = _elu(_mm(xcat, w_ref[E2X_O:E2R_O, :])
             + _mm(r, w_ref[E2R_O:EMX_O, :]) + b_ref[B_E2:B_E2 + 1, :])
    mu = (_mm(xcat, w_ref[EMX_O:EMR_O, :])
          + _mm(r, w_ref[EMR_O:W_ROWS, :]) + b_ref[B_MU:B_MU + 1, :])  # (1,128)

    mu_prior = mu[:, 0:OUTPUT_SIZE]
    mu_post = mu[:, OUTPUT_SIZE:2 * OUTPUT_SIZE]

    # reparameterize: std = exp(0.5*logvar) = var = FIX_VAR (constant); the
    # z_prior noise draw is never consumed downstream, so it is elided.
    z_post = mu_post + nz * FIX_VAR

    out_ref[0:1, :] = z_post + mu_prior
    out_ref[1:2, :] = mu_prior + mu_post
    out_ref[2:3, :] = mu_prior


# --------------------------- pallas_call plumbing -----------------------------

_FLOPS = int(2 * (N_PTS * PF_DIM * 3                       # VPU layer-1
                  + 2 * N_PTS * PF_DIM * PF_DIM            # point-feat layers 2/3
                  + 2 * PF_DIM * PF_DIM + PF_DIM * PF_DIM  # glb-feat layers
                  + 4 * (2 * INPUT_SIZE * PF_DIM + PF_DIM * PF_DIM)))  # encoders
_BYTES = 4 * (ACT_ROWS * 128 + W_ROWS * 128 + B_ROWS * 128 + 3 * OUTPUT_SIZE)


def _forward_impl(w_slab, b_slab, n_observation, n_target, hand_pts, obj_pts,
                  noise_post):
    # TODO(synk): wm_wana.split_state / euler_state_to_quat_wxyz /
    # forward_kinematics_* are external world-model ops with no Pallas
    # equivalent; hand_pts / obj_pts are taken directly as their (N, 3) outputs.
    pts = jnp.concatenate([hand_pts, obj_pts], axis=0)             # (96,3)
    pts = jnp.pad(pts, ((0, 0), (0, 128 - 3)))                     # lane-dense
    tail = jnp.concatenate(
        [n_observation, n_target, noise_post,
         jnp.zeros((1, 128 - NZ_HI), F32)], axis=1)                # (1,128)
    act = jnp.concatenate([pts, tail], axis=0)                     # (97,128)
    act = jnp.pad(act, ((0, ACT_ROWS - act.shape[0]), (0, 0)))     # (104,128)

    vmem = functools.partial(pl.BlockSpec, memory_space=pltpu.MemorySpace.VMEM)

    packed = pl.pallas_call(
        fused_kernel,
        out_shape=jax.ShapeDtypeStruct((3, OUTPUT_SIZE), F32),
        in_specs=[vmem(), vmem(), vmem()],
        out_specs=vmem(),
        cost_estimate=pl.CostEstimate(
            flops=_FLOPS,
            transcendentals=3 * 2 * HIDDEN,      # 3 ELU layers x 128 packed lanes
            bytes_accessed=_BYTES),
    )(act, w_slab, b_slab)

    return packed[0:1], packed[1:2], packed[2:3]


# single jitted executable: one launch, intermediates never touch HBM
visual_feats_learnable_prior_encoder_forward = jax.jit(_forward_impl)


# ------------------------------ parameter init --------------------------------

def _xavier(key, fan_in, fan_out):
    bound = math.sqrt(6.0 / (fan_in + fan_out))
    return jax.random.uniform(key, (fan_in, fan_out), F32, -bound, bound)


def init_params(key):
    """Per-layer ('torch-like') parameters."""
    ks = iter(jax.random.split(key, 64))
    p = {}
    # point type embedding: nn.Embedding(4, 128), default N(0,1)
    p["emb"] = jax.random.normal(next(ks), (4, EMB_DIM), F32)

    # point_feat_extraction_layer: Linear(3+128,128)/ReLU/Linear/ReLU/Linear
    p["pf_w1"] = _xavier(next(ks), 3 + EMB_DIM, PF_DIM)
    p["pf_b1"] = jax.random.normal(next(ks), (PF_DIM,), F32) * 0.02
    p["pf_w2"] = _xavier(next(ks), PF_DIM, PF_DIM)
    p["pf_b2"] = jax.random.normal(next(ks), (PF_DIM,), F32) * 0.02
    p["pf_w3"] = _xavier(next(ks), PF_DIM, PF_DIM)
    p["pf_b3"] = jax.random.normal(next(ks), (PF_DIM,), F32) * 0.02

    # glb_feat_layer: Linear(256,128)/ReLU/Linear(128,128)
    p["g_w1"] = _xavier(next(ks), 2 * PF_DIM, PF_DIM)
    p["g_b1"] = jax.random.normal(next(ks), (PF_DIM,), F32) * 0.02
    p["g_w2"] = _xavier(next(ks), PF_DIM, PF_DIM)
    p["g_b2"] = jax.random.normal(next(ks), (PF_DIM,), F32) * 0.02

    def encoder():
        # fc layers xavier_uniform weights / zero biases (per __init__)
        return dict(
            w0=_xavier(next(ks), INPUT_SIZE + COND_SIZE, HIDDEN),
            b0=jnp.zeros((HIDDEN,), F32),
            w1=_xavier(next(ks), INPUT_SIZE + HIDDEN, HIDDEN),
            b1=jnp.zeros((HIDDEN,), F32),
            w2=_xavier(next(ks), INPUT_SIZE + HIDDEN, HIDDEN),
            b2=jnp.zeros((HIDDEN,), F32),
            wm=_xavier(next(ks), INPUT_SIZE + HIDDEN, OUTPUT_SIZE),
            bm=jax.random.normal(next(ks), (OUTPUT_SIZE,), F32) * 0.02)

    p["prior"] = encoder()
    p["post"] = encoder()
    return p


def pack_params(p):
    """One-time packing into two lane-dense slabs consumed by the kernel."""
    def blkdiag(a, b):
        out = jnp.zeros((a.shape[0] + b.shape[0], a.shape[1] + b.shape[1]), F32)
        out = out.at[:a.shape[0], :a.shape[1]].set(a)
        return out.at[a.shape[0]:, a.shape[1]:].set(b)

    def lane_row(v):
        return jnp.zeros((1, PF_DIM), F32).at[0, :v.shape[0]].set(v)

    # call-invariant type-embedding term of point-feat layer-1, folded into a
    # per-cloud segment bias (hand -> type 0, obj -> type 1).
    # TODO(synk): confirm these point-type indices match the original module.
    seg_bias = p["emb"][0:2] @ p["pf_w1"][3:] + p["pf_b1"][None, :]   # (2,128)

    A, B = p["prior"], p["post"]
    IN = INPUT_SIZE
    pad_mu = ((0, 0), (0, PF_DIM - 2 * OUTPUT_SIZE))
    w_slab = jnp.concatenate([
        jnp.pad(p["pf_w1"][:3], ((0, 5), (0, 0))),                    # 0:8
        p["pf_w2"], p["pf_w3"],                                        # 8:136, 136:264
        p["g_w1"], p["g_w2"],                                          # 264:520, 520:648
        blkdiag(A["w0"][:IN], B["w0"][:IN]),                           # 648:712
        jnp.concatenate([A["w0"][IN:], B["w0"][IN:]], axis=1),         # 712:840
        blkdiag(A["w1"][:IN], B["w1"][:IN]),                           # 840:904
        blkdiag(A["w1"][IN:], B["w1"][IN:]),                           # 904:1032
        blkdiag(A["w2"][:IN], B["w2"][:IN]),                           # 1032:1096
        blkdiag(A["w2"][IN:], B["w2"][IN:]),                           # 1096:1224
        jnp.pad(blkdiag(A["wm"][:IN], B["wm"][:IN]), pad_mu),          # 1224:1288
        jnp.pad(blkdiag(A["wm"][IN:], B["wm"][IN:]), pad_mu),          # 1288:1416
    ], axis=0)
    assert w_slab.shape == (W_ROWS, PF_DIM)

    b_slab = jnp.concatenate([
        seg_bias,
        lane_row(p["pf_b2"]), lane_row(p["pf_b3"]),
        lane_row(p["g_b1"]), lane_row(p["g_b2"]),
        lane_row(jnp.concatenate([A["b0"], B["b0"]])),
        lane_row(jnp.concatenate([A["b1"], B["b1"]])),
        lane_row(jnp.concatenate([A["b2"], B["b2"]])),
        lane_row(jnp.concatenate([A["bm"], B["bm"]])),
        jnp.zeros((B_ROWS - 10, PF_DIM), F32),
    ], axis=0)
    assert b_slab.shape == (B_ROWS, PF_DIM)
    return w_slab, b_slab


# ----------------------------------- main --------------------------------------

if __name__ == "__main__":
    key = jax.random.PRNGKey(0)
    kp, kobs, ktgt, khand, kobj, kn = jax.random.split(key, 6)

    params = init_params(kp)
    w_slab, b_slab = pack_params(params)          # parameter-prep time (once)

    n_observation = jax.random.normal(kobs, (1, INPUT_SIZE), F32)
    n_target = jax.random.normal(ktgt, (1, INPUT_SIZE), F32)
    hand_pts = jax.random.normal(khand, (N_HAND_PTS, 3), F32)   # stand-in for forward_kinematics_v2 output
    obj_pts = jax.random.normal(kobj, (N_OBJ_PTS, 3), F32)      # stand-in for forward_kinematics_obj output
    noise_post = jax.random.normal(kn, (1, OUTPUT_SIZE), F32)   # torch.randn_like(std) equivalent

    out = visual_feats_learnable_prior_encoder_forward(
        w_slab, b_slab, n_observation, n_target, hand_pts, obj_pts, noise_post)
    out = jax.block_until_ready(out)

    assert all(o.shape == (1, OUTPUT_SIZE) for o in out)
    assert all(bool(jnp.all(jnp.isfinite(o))) for o in out)
    print("KERNEL_OK")
</pallas_src>

<mosaic_0001>
module attributes {stable_mosaic.version = 11 : i64} {
  func.func @fused_kernel(%arg0: memref<104x128xf32, #tpu.memory_space<vmem>>, %arg1: memref<1416x128xf32, #tpu.memory_space<vmem>>, %arg2: memref<16x128xf32, #tpu.memory_space<vmem>>, %arg3: memref<3x16xf32, #tpu.memory_space<vmem>>) attributes {dimension_semantics = [], scalar_prefetch = 0 : i64, scratch_operands = 0 : i64, tpu.core_type = #tpu.core_type<tc>} {
    %c0 = arith.constant 0 : index
    %c0_0 = arith.constant 0 : index
    %0 = vector.load %arg0[%c0, %c0_0] : memref<104x128xf32, #tpu.memory_space<vmem>>, vector<96x128xf32>
    %c0_1 = arith.constant 0 : index
    %c0_2 = arith.constant 0 : index
    %1 = vector.load %arg1[%c0_1, %c0_2] : memref<1416x128xf32, #tpu.memory_space<vmem>>, vector<3x128xf32>
    %2 = vector.extract_strided_slice %0 {offsets = [0, 0], sizes = [96, 1], strides = [1, 1]} : vector<96x128xf32> to vector<96x1xf32>
    %3 = vector.extract_strided_slice %1 {offsets = [0, 0], sizes = [1, 128], strides = [1, 1]} : vector<3x128xf32> to vector<1x128xf32>
    %4 = vector.broadcast %2 : vector<96x1xf32> to vector<96x128xf32>
    %5 = vector.broadcast %3 : vector<1x128xf32> to vector<96x128xf32>
    %6 = arith.mulf %4, %5 : vector<96x128xf32>
    %7 = vector.extract_strided_slice %0 {offsets = [0, 1], sizes = [96, 1], strides = [1, 1]} : vector<96x128xf32> to vector<96x1xf32>
    %8 = vector.extract_strided_slice %1 {offsets = [1, 0], sizes = [1, 128], strides = [1, 1]} : vector<3x128xf32> to vector<1x128xf32>
    %9 = vector.broadcast %7 : vector<96x1xf32> to vector<96x128xf32>
    %10 = vector.broadcast %8 : vector<1x128xf32> to vector<96x128xf32>
    %11 = arith.mulf %9, %10 : vector<96x128xf32>
    %12 = arith.addf %6, %11 : vector<96x128xf32>
    %13 = vector.extract_strided_slice %0 {offsets = [0, 2], sizes = [96, 1], strides = [1, 1]} : vector<96x128xf32> to vector<96x1xf32>
    %14 = vector.extract_strided_slice %1 {offsets = [2, 0], sizes = [1, 128], strides = [1, 1]} : vector<3x128xf32> to vector<1x128xf32>
    %15 = vector.broadcast %13 : vector<96x1xf32> to vector<96x128xf32>
    %16 = vector.broadcast %14 : vector<1x128xf32> to vector<96x128xf32>
    %17 = arith.mulf %15, %16 : vector<96x128xf32>
    %18 = arith.addf %12, %17 : vector<96x128xf32>
    %19 = vector.extract_strided_slice %18 {offsets = [0, 0], sizes = [64, 128], strides = [1, 1]} : vector<96x128xf32> to vector<64x128xf32>
    %c0_3 = arith.constant 0 : index
    %c0_4 = arith.constant 0 : index
    %20 = vector.load %arg2[%c0_3, %c0_4] : memref<16x128xf32, #tpu.memory_space<vmem>>, vector<1x128xf32>
    %21 = vector.broadcast %20 : vector<1x128xf32> to vector<64x128xf32>
    %22 = arith.addf %19, %21 : vector<64x128xf32>
    %23 = vector.extract_strided_slice %18 {offsets = [64, 0], sizes = [32, 128], strides = [1, 1]} : vector<96x128xf32> to vector<32x128xf32>
    %c1 = arith.constant 1 : index
    %c0_5 = arith.constant 0 : index
    %24 = vector.load %arg2[%c1, %c0_5] : memref<16x128xf32, #tpu.memory_space<vmem>>, vector<1x128xf32>
    %25 = vector.broadcast %24 : vector<1x128xf32> to vector<32x128xf32>
    %26 = arith.addf %23, %25 : vector<32x128xf32>
    %27 = tpu.concatenate %22, %26 in 0 : vector<64x128xf32>, vector<32x128xf32> -> vector<96x128xf32>
    %cst = arith.constant 0.000000e+00 : f32
    %28 = vector.broadcast %cst : f32 to vector<96x128xf32>
    %29 = arith.maximumf %27, %28 : vector<96x128xf32>
    %c8 = arith.constant 8 : index
    %c0_6 = arith.constant 0 : index
    %30 = vector.load %arg1[%c8, %c0_6] : memref<1416x128xf32, #tpu.memory_space<vmem>>, vector<128x128xf32>
    %cst_7 = arith.constant dense<0.000000e+00> : vector<96x128xf32>
    %31 = tpu.matmul %29, %30, %cst_7 {dimension_numbers = #tpu.dot_dimension_numbers<[1], [0], [0], [1], [0, 0, 1, 1], [], []>} : vector<96x128xf32>, vector<128x128xf32>, vector<96x128xf32> -> vector<96x128xf32>
    %c2 = arith.constant 2 : index
    %c0_8 = arith.constant 0 : index
    %32 = vector.load %arg2[%c2, %c0_8] : memref<16x128xf32, #tpu.memory_space<vmem>>, vector<1x128xf32>
    %33 = vector.broadcast %32 : vector<1x128xf32> to vector<96x128xf32>
    %34 = arith.addf %31, %33 : vector<96x128xf32>
    %cst_9 = arith.constant 0.000000e+00 : f32
    %35 = vector.broadcast %cst_9 : f32 to vector<96x128xf32>
    %36 = arith.maximumf %34, %35 : vector<96x128xf32>
    %c136 = arith.constant 136 : index
    %c0_10 = arith.constant 0 : index
    %37 = vector.load %arg1[%c136, %c0_10] : memref<1416x128xf32, #tpu.memory_space<vmem>>, vector<128x128xf32>
    %cst_11 = arith.constant dense<0.000000e+00> : vector<96x128xf32>
    %38 = tpu.matmul %36, %37, %cst_11 {dimension_numbers = #tpu.dot_dimension_numbers<[1], [0], [0], [1], [0, 0, 1, 1], [], []>} : vector<96x128xf32>, vector<128x128xf32>, vector<96x128xf32> -> vector<96x128xf32>
    %c3 = arith.constant 3 : index
    %c0_12 = arith.constant 0 : index
    %39 = vector.load %arg2[%c3, %c0_12] : memref<16x128xf32, #tpu.memory_space<vmem>>, vector<1x128xf32>
    %40 = vector.broadcast %39 : vector<1x128xf32> to vector<96x128xf32>
    %41 = arith.addf %38, %40 : vector<96x128xf32>
    %42 = vector.extract_strided_slice %41 {offsets = [0, 0], sizes = [64, 128], strides = [1, 1]} : vector<96x128xf32> to vector<64x128xf32>
    %cst_13 = arith.constant dense<0xFF800000> : vector<128xf32>
    %43 = vector.multi_reduction <maximumf>, %42, %cst_13 [0] : vector<64x128xf32> to vector<128xf32>
    %44 = vector.shape_cast %43 : vector<128xf32> to vector<1x128xf32>
    %45 = vector.extract_strided_slice %41 {offsets = [64, 0], sizes = [32, 128], strides = [1, 1]} : vector<96x128xf32> to vector<32x128xf32>
    %cst_14 = arith.constant dense<0xFF800000> : vector<128xf32>
    %46 = vector.multi_reduction <maximumf>, %45, %cst_14 [0] : vector<32x128xf32> to vector<128xf32>
    %47 = vector.shape_cast %46 : vector<128xf32> to vector<1x128xf32>
    %48 = tpu.concatenate %44, %47 in 1 : vector<1x128xf32>, vector<1x128xf32> -> vector<1x256xf32>
    %c264 = arith.constant 264 : index
    %c0_15 = arith.constant 0 : index
    %49 = vector.load %arg1[%c264, %c0_15] : memref<1416x128xf32, #tpu.memory_space<vmem>>, vector<256x128xf32>
    %cst_16 = arith.constant dense<0.000000e+00> : vector<1x128xf32>
    %50 = tpu.matmul %48, %49, %cst_16 {dimension_numbers = #tpu.dot_dimension_numbers<[1], [0], [0], [1], [0, 0, 1, 1], [], []>} : vector<1x256xf32>, vector<256x128xf32>, vector<1x128xf32> -> vector<1x128xf32>
    %c4 = arith.constant 4 : index
    %c0_17 = arith.constant 0 : index
    %51 = vector.load %arg2[%c4, %c0_17] : memref<16x128xf32, #tpu.memory_space<vmem>>, vector<1x128xf32>
    %52 = arith.addf %50, %51 : vector<1x128xf32>
    %cst_18 = arith.constant 0.000000e+00 : f32
    %53 = vector.broadcast %cst_18 : f32 to vector<1x128xf32>
    %54 = arith.maximumf %52, %53 : vector<1x128xf32>
    %c520 = arith.constant 520 : index
    %c0_19 = arith.constant 0 : index
    %55 = vector.load %arg1[%c520, %c0_19] : memref<1416x128xf32, #tpu.memory_space<vmem>>, vector<128x128xf32>
    %cst_20 = arith.constant dense<0.000000e+00> : vector<1x128xf32>
    %56 = tpu.matmul %54, %55, %cst_20 {dimension_numbers = #tpu.dot_dimension_numbers<[1], [0], [0], [1], [0, 0, 1, 1], [], []>} : vector<1x128xf32>, vector<128x128xf32>, vector<1x128xf32> -> vector<1x128xf32>
    %c5 = arith.constant 5 : index
    %c0_21 = arith.constant 0 : index
    %57 = vector.load %arg2[%c5, %c0_21] : memref<16x128xf32, #tpu.memory_space<vmem>>, vector<1x128xf32>
    %58 = arith.addf %56, %57 : vector<1x128xf32>
    %c96 = arith.constant 96 : index
    %c0_22 = arith.constant 0 : index
    %59 = vector.load %arg0[%c96, %c0_22] : memref<104x128xf32, #tpu.memory_space<vmem>>, vector<1x64xf32>
    %c96_23 = arith.constant 96 : index
    %c64 = arith.constant 64 : index
    %60 = vector.load %arg0[%c96_23, %c64] : memref<104x128xf32, #tpu.memory_space<vmem>>, vector<1x16xf32>
    %c648 = arith.constant 648 : index
    %c0_24 = arith.constant 0 : index
    %61 = vector.load %arg1[%c648, %c0_24] : memref<1416x128xf32, #tpu.memory_space<vmem>>, vector<64x128xf32>
    %cst_25 = arith.constant dense<0.000000e+00> : vector<1x128xf32>
    %62 = tpu.matmul %59, %61, %cst_25 {dimension_numbers = #tpu.dot_dimension_numbers<[1], [0], [0], [1], [0, 0, 1, 1], [], []>} : vector<1x64xf32>, vector<64x128xf32>, vector<1x128xf32> -> vector<1x128xf32>
    %c712 = arith.constant 712 : index
    %c0_26 = arith.constant 0 : index
    %63 = vector.load %arg1[%c712, %c0_26] : memref<1416x128xf32, #tpu.memory_space<vmem>>, vector<128x128xf32>
    %cst_27 = arith.constant dense<0.000000e+00> : vector<1x128xf32>
    %64 = tpu.matmul %58, %63, %cst_27 {dimension_numbers = #tpu.dot_dimension_numbers<[1], [0], [0], [1], [0, 0, 1, 1], [], []>} : vector<1x128xf32>, vector<128x128xf32>, vector<1x128xf32> -> vector<1x128xf32>
    %65 = arith.addf %62, %64 : vector<1x128xf32>
    %c6 = arith.constant 6 : index
    %c0_28 = arith.constant 0 : index
    %66 = vector.load %arg2[%c6, %c0_28] : memref<16x128xf32, #tpu.memory_space<vmem>>, vector<1x128xf32>
    %67 = arith.addf %65, %66 : vector<1x128xf32>
    %cst_29 = arith.constant 0.000000e+00 : f32
    %68 = vector.broadcast %cst_29 : f32 to vector<1x128xf32>
    %69 = arith.cmpf ogt, %67, %68 : vector<1x128xf32>
    %cst_30 = arith.constant 0.000000e+00 : f32
    %70 = vector.broadcast %cst_30 : f32 to vector<1x128xf32>
    %71 = arith.minimumf %67, %70 : vector<1x128xf32>
    %72 = math.exp %71 : vector<1x128xf32>
    %cst_31 = arith.constant 1.000000e+00 : f32
    %73 = vector.broadcast %cst_31 : f32 to vector<1x128xf32>
    %74 = arith.subf %72, %73 : vector<1x128xf32>
    %75 = arith.select %69, %67, %74 : vector<1x128xi1>, vector<1x128xf32>
    %c840 = arith.constant 840 : index
    %c0_32 = arith.constant 0 : index
    %76 = vector.load %arg1[%c840, %c0_32] : memref<1416x128xf32, #tpu.memory_space<vmem>>, vector<64x128xf32>
    %cst_33 = arith.constant dense<0.000000e+00> : vector<1x128xf32>
    %77 = tpu.matmul %59, %76, %cst_33 {dimension_numbers = #tpu.dot_dimension_numbers<[1], [0], [0], [1], [0, 0, 1, 1], [], []>} : vector<1x64xf32>, vector<64x128xf32>, vector<1x128xf32> -> vector<1x128xf32>
    %c904 = arith.constant 904 : index
    %c0_34 = arith.constant 0 : index
    %78 = vector.load %arg1[%c904, %c0_34] : memref<1416x128xf32, #tpu.memory_space<vmem>>, vector<128x128xf32>
    %cst_35 = arith.constant dense<0.000000e+00> : vector<1x128xf32>
    %79 = tpu.matmul %75, %78, %cst_35 {dimension_numbers = #tpu.dot_dimension_numbers<[1], [0], [0], [1], [0, 0, 1, 1], [], []>} : vector<1x128xf32>, vector<128x128xf32>, vector<1x128xf32> -> vector<1x128xf32>
    %80 = arith.addf %77, %79 : vector<1x128xf32>
    %c7 = arith.constant 7 : index
    %c0_36 = arith.constant 0 : index
    %81 = vector.load %arg2[%c7, %c0_36] : memref<16x128xf32, #tpu.memory_space<vmem>>, vector<1x128xf32>
    %82 = arith.addf %80, %81 : vector<1x128xf32>
    %cst_37 = arith.constant 0.000000e+00 : f32
    %83 = vector.broadcast %cst_37 : f32 to vector<1x128xf32>
    %84 = arith.cmpf ogt, %82, %83 : vector<1x128xf32>
    %cst_38 = arith.constant 0.000000e+00 : f32
    %85 = vector.broadcast %cst_38 : f32 to vector<1x128xf32>
    %86 = arith.minimumf %82, %85 : vector<1x128xf32>
    %87 = math.exp %86 : vector<1x128xf32>
    %cst_39 = arith.constant 1.000000e+00 : f32
    %88 = vector.broadcast %cst_39 : f32 to vector<1x128xf32>
    %89 = arith.subf %87, %88 : vector<1x128xf32>
    %90 = arith.select %84, %82, %89 : vector<1x128xi1>, vector<1x128xf32>
    %c1032 = arith.constant 1032 : index
    %c0_40 = arith.constant 0 : index
    %91 = vector.load %arg1[%c1032, %c0_40] : memref<1416x128xf32, #tpu.memory_space<vmem>>, vector<64x128xf32>
    %cst_41 = arith.constant dense<0.000000e+00> : vector<1x128xf32>
    %92 = tpu.matmul %59, %91, %cst_41 {dimension_numbers = #tpu.dot_dimension_numbers<[1], [0], [0], [1], [0, 0, 1, 1], [], []>} : vector<1x64xf32>, vector<64x128xf32>, vector<1x128xf32> -> vector<1x128xf32>
    %c1096 = arith.constant 1096 : index
    %c0_42 = arith.constant 0 : index
    %93 = vector.load %arg1[%c1096, %c0_42] : memref<1416x128xf32, #tpu.memory_space<vmem>>, vector<128x128xf32>
    %cst_43 = arith.constant dense<0.000000e+00> : vector<1x128xf32>
    %94 = tpu.matmul %90, %93, %cst_43 {dimension_numbers = #tpu.dot_dimension_numbers<[1], [0], [0], [1], [0, 0, 1, 1], [], []>} : vector<1x128xf32>, vector<128x128xf32>, vector<1x128xf32> -> vector<1x128xf32>
    %95 = arith.addf %92, %94 : vector<1x128xf32>
    %c8_44 = arith.constant 8 : index
    %c0_45 = arith.constant 0 : index
    %96 = vector.load %arg2[%c8_44, %c0_45] : memref<16x128xf32, #tpu.memory_space<vmem>>, vector<1x128xf32>
    %97 = arith.addf %95, %96 : vector<1x128xf32>
    %cst_46 = arith.constant 0.000000e+00 : f32
    %98 = vector.broadcast %cst_46 : f32 to vector<1x128xf32>
    %99 = arith.cmpf ogt, %97, %98 : vector<1x128xf32>
    %cst_47 = arith.constant 0.000000e+00 : f32
    %100 = vector.broadcast %cst_47 : f32 to vector<1x128xf32>
    %101 = arith.minimumf %97, %100 : vector<1x128xf32>
    %102 = math.exp %101 : vector<1x128xf32>
    %cst_48 = arith.constant 1.000000e+00 : f32
    %103 = vector.broadcast %cst_48 : f32 to vector<1x128xf32>
    %104 = arith.subf %102, %103 : vector<1x128xf32>
    %105 = arith.select %99, %97, %104 : vector<1x128xi1>, vector<1x128xf32>
    %c1224 = arith.constant 1224 : index
    %c0_49 = arith.constant 0 : index
    %106 = vector.load %arg1[%c1224, %c0_49] : memref<1416x128xf32, #tpu.memory_space<vmem>>, vector<64x128xf32>
    %cst_50 = arith.constant dense<0.000000e+00> : vector<1x128xf32>
    %107 = tpu.matmul %59, %106, %cst_50 {dimension_numbers = #tpu.dot_dimension_numbers<[1], [0], [0], [1], [0, 0, 1, 1], [], []>} : vector<1x64xf32>, vector<64x128xf32>, vector<1x128xf32> -> vector<1x128xf32>
    %c1288 = arith.constant 1288 : index
    %c0_51 = arith.constant 0 : index
    %108 = vector.load %arg1[%c1288, %c0_51] : memref<1416x128xf32, #tpu.memory_space<vmem>>, vector<128x128xf32>
    %cst_52 = arith.constant dense<0.000000e+00> : vector<1x128xf32>
    %109 = tpu.matmul %105, %108, %cst_52 {dimension_numbers = #tpu.dot_dimension_numbers<[1], [0], [0], [1], [0, 0, 1, 1], [], []>} : vector<1x128xf32>, vector<128x128xf32>, vector<1x128xf32> -> vector<1x128xf32>
    %110 = arith.addf %107, %109 : vector<1x128xf32>
    %c9 = arith.constant 9 : index
    %c0_53 = arith.constant 0 : index
    %111 = vector.load %arg2[%c9, %c0_53] : memref<16x128xf32, #tpu.memory_space<vmem>>, vector<1x128xf32>
    %112 = arith.addf %110, %111 : vector<1x128xf32>
    %113 = vector.extract_strided_slice %112 {offsets = [0, 0], sizes = [1, 16], strides = [1, 1]} : vector<1x128xf32> to vector<1x16xf32>
    %114 = vector.extract_strided_slice %112 {offsets = [0, 16], sizes = [1, 16], strides = [1, 1]} : vector<1x128xf32> to vector<1x16xf32>
    %cst_54 = arith.constant 3.000000e-01 : f32
    %115 = vector.broadcast %cst_54 : f32 to vector<1x16xf32>
    %116 = arith.mulf %60, %115 : vector<1x16xf32>
    %117 = arith.addf %114, %116 : vector<1x16xf32>
    %118 = arith.addf %117, %113 : vector<1x16xf32>
    %c0_55 = arith.constant 0 : index
    %c0_56 = arith.constant 0 : index
    %119 = vector.load %arg3[%c0_55, %c0_56] : memref<3x16xf32, #tpu.memory_space<vmem>>, vector<1x16xf32>
    tpu.vector_store %arg3[%c0_55, %c0_56], %118 {strides = array<i32>} : memref<3x16xf32, #tpu.memory_space<vmem>>, vector<1x16xf32>,
    %120 = arith.addf %113, %114 : vector<1x16xf32>
    %c1_57 = arith.constant 1 : index
    %c0_58 = arith.constant 0 : index
    %121 = vector.load %arg3[%c1_57, %c0_58] : memref<3x16xf32, #tpu.memory_space<vmem>>, vector<1x16xf32>
    tpu.vector_store %arg3[%c1_57, %c0_58], %120 {strides = array<i32>} : memref<3x16xf32, #tpu.memory_space<vmem>>, vector<1x16xf32>,
    %c2_59 = arith.constant 2 : index
    %c0_60 = arith.constant 0 : index
    %122 = vector.load %arg3[%c2_59, %c0_60] : memref<3x16xf32, #tpu.memory_space<vmem>>, vector<1x16xf32>
    tpu.vector_store %arg3[%c2_59, %c0_60], %113 {strides = array<i32>} : memref<3x16xf32, #tpu.memory_space<vmem>>, vector<1x16xf32>,
    return
  }
}

</mosaic_0001>

<llo_original>
// kernel: _forward_impl.1
$region0: #{_forward_impl.1}
  #allocation0 [shape = 'u32[]', space=smem, size = 0x4, offset = 0x4, fixed_abs, tag = 'smem constant byte address 0x4 - core index']
  #allocation1 [shape = 'u32[144,128]{1,0:T(1,128)}', space=vmem, size = 0x12000, scoped, tag = 'internal scratch']
  %s0 = inlined_call_operand.vmem [shape: f32[104,128], index: 0, kind: input, shape index: {}]
  %s1 = inlined_call_operand.hbm [shape: f32[1416,128], index: 1, kind: input, shape index: {}]
  %s2 = inlined_call_operand.vmem [shape: f32[16,128], index: 2, kind: input, shape index: {}]
  %s3 = inlined_call_operand.vmem [shape: f32[3,16], index: 3, kind: output, shape index: {}]
  %s4 = sld [smem:[#allocation0]]
  $region26: #{_forward_impl.1} parent=0
    _
  %s6 = ssub.s32 1, %s4
  %s7 = scalar_select 0, %s6, %s4
  $region1: #{_forward_impl.1} parent=0
    #allocation2 [shape = 'u8[724992]{0}', space=vmem, size = 0xb1000, scoped, tag = 'input window, operand 1, single buffered']
    #allocation3 [shape = 's32[1]{0}', space=sflag, size = 0x4, scoped, tag = 'scoped memory for _forward_impl.1']
    %8 = vsyncpa [#allocation3], 0
    // Predicated region
    $region2: #{_forward_impl.1} parent=1 // pred_check
      _
    $region3: #{_forward_impl.1} parent=1 // pred_check_branch
      %10 = sbr.rel (0) target = $region5
    $region4: #{_forward_impl.1} parent=1 // pred_region
      _
    $region5: #{_forward_impl.1} parent=1 // pred_fallthru
      _
    // Predicated region
    $region6: #{_forward_impl.1} parent=1 // pred_check
      _
    $region7: #{_forward_impl.1} parent=1 // pred_check_branch
      %12 = sbr.rel (0) target = $region9
    $region8: #{_forward_impl.1} parent=1 // pred_region
      %s14 = ssub.s32 22656, 22656
      %15 = vsyncadd [#allocation3], %s14
      %s16 = sshll.u32 [#allocation2], 4
      %s17 = int_to_ptr.vmem [resolvable:$true] %s16
      %22 = dma.hbm_to_vmem [thread:$0]  %s1, 22656, %s17, [#allocation3], 128, 128, 8
    $region9: #{_forward_impl.1} parent=1 // pred_fallthru
      _
    // Predicated region
    $region10: #{_forward_impl.1} parent=1 // pred_check
      _
    $region11: #{_forward_impl.1} parent=1 // pred_check_branch
      %24 = sbr.rel (0) target = $region13
    $region12: #{_forward_impl.1} parent=1 // pred_region
      _
    $region13: #{_forward_impl.1} parent=1 // pred_fallthru
      _
    // Predicated region
    $region14: #{_forward_impl.1} parent=1 // pred_check
      _
    $region15: #{_forward_impl.1} parent=1 // pred_check_branch
      %26 = sbr.rel (0) target = $region17
    $region16: #{_forward_impl.1} parent=1 // pred_region
      %27 = dma.done [#allocation3], 22656
    $region17: #{_forward_impl.1} parent=1 // pred_fallthru
      _
    %v28 = vld [vmem:[%s0] sm:$0xff]
    %v29 = vld [vmem:[%s0 + $0x8] sm:$0xff]
    %v30 = vld [vmem:[%s0 + $0x10] sm:$0xff]
    %v31 = vld [vmem:[%s0 + $0x18] sm:$0xff]
    %v32 = vld [vmem:[%s0 + $0x20] sm:$0xff]
    %v33 = vld [vmem:[%s0 + $0x28] sm:$0xff]
    %v34 = vld [vmem:[%s0 + $0x30] sm:$0xff]
    %v35 = vld [vmem:[%s0 + $0x38] sm:$0xff]
    %v36 = vld [vmem:[%s0 + $0x40] sm:$0xff]
    %v37 = vld [vmem:[%s0 + $0x48] sm:$0xff]
    %v38 = vld [vmem:[%s0 + $0x50] sm:$0xff]
    %v39 = vld [vmem:[%s0 + $0x58] sm:$0xff]
    %v40 = vld [vmem:[#allocation2] sm:$0x7]
    %42 = vset.pattern.permute.xlu0 0
    %43 = vperm.xlu0 %42, %v28
    %v44 = vpop.permute.xlu0 %43
    %47 = vset.pattern.permute.xlu0 0
    %48 = vperm.xlu0 %47, %v29
    %v49 = vpop.permute.xlu0 %48
    %52 = vset.pattern.permute.xlu0 0
    %53 = vperm.xlu0 %52, %v30
    %v54 = vpop.permute.xlu0 %53
    %57 = vset.pattern.permute.xlu0 0
    %58 = vperm.xlu0 %57, %v31
    %v59 = vpop.permute.xlu0 %58
    %62 = vset.pattern.permute.xlu0 0
    %63 = vperm.xlu0 %62, %v32
    %v64 = vpop.permute.xlu0 %63
    %67 = vset.pattern.permute.xlu0 0
    %68 = vperm.xlu0 %67, %v33
    %v69 = vpop.permute.xlu0 %68
    %72 = vset.pattern.permute.xlu0 0
    %73 = vperm.xlu0 %72, %v34
    %v74 = vpop.permute.xlu0 %73
    %77 = vset.pattern.permute.xlu0 0
    %78 = vperm.xlu0 %77, %v35
    %v79 = vpop.permute.xlu0 %78
    %82 = vset.pattern.permute.xlu0 0
    %83 = vperm.xlu0 %82, %v36
    %v84 = vpop.permute.xlu0 %83
    %87 = vset.pattern.permute.xlu0 0
    %88 = vperm.xlu0 %87, %v37
    %v89 = vpop.permute.xlu0 %88
    %92 = vset.pattern.permute.xlu0 0
    %93 = vperm.xlu0 %92, %v38
    %v94 = vpop.permute.xlu0 %93
    %97 = vset.pattern.permute.xlu0 0
    %98 = vperm.xlu0 %97, %v39
    %v99 = vpop.permute.xlu0 %98
    %v101 = vlaneseq
    %v102 = vshrl.u32 %v101, 7
    %v103 = vsub.s32 0, %v102
    %v104 = vrot.slane %v40, %v103
    %v105 = vmul.f32 %v44, %v104
    %v106 = vmul.f32 %v49, %v104
    %v107 = vmul.f32 %v54, %v104
    %v108 = vmul.f32 %v59, %v104
    %v109 = vmul.f32 %v64, %v104
    %v110 = vmul.f32 %v69, %v104
    %v111 = vmul.f32 %v74, %v104
    %v112 = vmul.f32 %v79, %v104
    %v113 = vmul.f32 %v84, %v104
    %v114 = vmul.f32 %v89, %v104
    %v115 = vmul.f32 %v94, %v104
    %v116 = vmul.f32 %v99, %v104
    %117 = vset.pattern.permute.xlu0 1
    %118 = vperm.xlu0 %117, %v28
    %v119 = vpop.permute.xlu0 %118
    %121 = vset.pattern.permute.xlu0 1
    %122 = vperm.xlu0 %121, %v29
    %v123 = vpop.permute.xlu0 %122
    %125 = vset.pattern.permute.xlu0 1
    %126 = vperm.xlu0 %125, %v30
    %v127 = vpop.permute.xlu0 %126
    %129 = vset.pattern.permute.xlu0 1
    %130 = vperm.xlu0 %129, %v31
    %v131 = vpop.permute.xlu0 %130
    %133 = vset.pattern.permute.xlu0 1
    %134 = vperm.xlu0 %133, %v32
    %v135 = vpop.permute.xlu0 %134
    %137 = vset.pattern.permute.xlu0 1
    %138 = vperm.xlu0 %137, %v33
    %v139 = vpop.permute.xlu0 %138
    %141 = vset.pattern.permute.xlu0 1
    %142 = vperm.xlu0 %141, %v34
    %v143 = vpop.permute.xlu0 %142
    %145 = vset.pattern.permute.xlu0 1
    %146 = vperm.xlu0 %145, %v35
    %v147 = vpop.permute.xlu0 %146
    %149 = vset.pattern.permute.xlu0 1
    %150 = vperm.xlu0 %149, %v36
    %v151 = vpop.permute.xlu0 %150
    %153 = vset.pattern.permute.xlu0 1
    %154 = vperm.xlu0 %153, %v37
    %v155 = vpop.permute.xlu0 %154
    %157 = vset.pattern.permute.xlu0 1
    %158 = vperm.xlu0 %157, %v38
    %v159 = vpop.permute.xlu0 %158
    %161 = vset.pattern.permute.xlu0 1
    %162 = vperm.xlu0 %161, %v39
    %v163 = vpop.permute.xlu0 %162
    %v165 = vlaneseq
    %v166 = vshrl.u32 %v165, 7
    %v167 = vsub.s32 1, %v166
    %v168 = vrot.slane %v40, %v167
    %v169 = vmul.f32 %v119, %v168
    %v170 = vmul.f32 %v123, %v168
    %v171 = vmul.f32 %v127, %v168
    %v172 = vmul.f32 %v131, %v168
    %v173 = vmul.f32 %v135, %v168
    %v174 = vmul.f32 %v139, %v168
    %v175 = vmul.f32 %v143, %v168
    %v176 = vmul.f32 %v147, %v168
    %v177 = vmul.f32 %v151, %v168
    %v178 = vmul.f32 %v155, %v168
    %v179 = vmul.f32 %v159, %v168
    %v180 = vmul.f32 %v163, %v168
    %v181 = vadd.f32 %v105, %v169
    %v182 = vadd.f32 %v106, %v170
    %v183 = vadd.f32 %v107, %v171
    %v184 = vadd.f32 %v108, %v172
    %v185 = vadd.f32 %v109, %v173
    %v186 = vadd.f32 %v110, %v174
    %v187 = vadd.f32 %v111, %v175
    %v188 = vadd.f32 %v112, %v176
    %v189 = vadd.f32 %v113, %v177
    %v190 = vadd.f32 %v114, %v178
    %v191 = vadd.f32 %v115, %v179
    %v192 = vadd.f32 %v116, %v180
    %193 = vset.pattern.permute.xlu0 2
    %194 = vperm.xlu0 %193, %v28
    %v195 = vpop.permute.xlu0 %194
    %197 = vset.pattern.permute.xlu0 2
    %198 = vperm.xlu0 %197, %v29
    %v199 = vpop.permute.xlu0 %198
    %201 = vset.pattern.permute.xlu0 2
    %202 = vperm.xlu0 %201, %v30
    %v203 = vpop.permute.xlu0 %202
    %205 = vset.pattern.permute.xlu0 2
    %206 = vperm.xlu0 %205, %v31
    %v207 = vpop.permute.xlu0 %206
    %209 = vset.pattern.permute.xlu0 2
    %210 = vperm.xlu0 %209, %v32
    %v211 = vpop.permute.xlu0 %210
    %213 = vset.pattern.permute.xlu0 2
    %214 = vperm.xlu0 %213, %v33
    %v215 = vpop.permute.xlu0 %214
    %217 = vset.pattern.permute.xlu0 2
    %218 = vperm.xlu0 %217, %v34
    %v219 = vpop.permute.xlu0 %218
    %221 = vset.pattern.permute.xlu0 2
    %222 = vperm.xlu0 %221, %v35
    %v223 = vpop.permute.xlu0 %222
    %225 = vset.pattern.permute.xlu0 2
    %226 = vperm.xlu0 %225, %v36
    %v227 = vpop.permute.xlu0 %226
    %229 = vset.pattern.permute.xlu0 2
    %230 = vperm.xlu0 %229, %v37
    %v231 = vpop.permute.xlu0 %230
    %233 = vset.pattern.permute.xlu0 2
    %234 = vperm.xlu0 %233, %v38
    %v235 = vpop.permute.xlu0 %234
    %237 = vset.pattern.permute.xlu0 2
    %238 = vperm.xlu0 %237, %v39
    %v239 = vpop.permute.xlu0 %238
    %v241 = vlaneseq
    %v242 = vshrl.u32 %v241, 7
    %v243 = vsub.s32 2, %v242
    %v244 = vrot.slane %v40, %v243
    %v245 = vmul.f32 %v195, %v244
    %v246 = vmul.f32 %v199, %v244
    %v247 = vmul.f32 %v203, %v244
    %v248 = vmul.f32 %v207, %v244
    %v249 = vmul.f32 %v211, %v244
    %v250 = vmul.f32 %v215, %v244
    %v251 = vmul.f32 %v219, %v244
    %v252 = vmul.f32 %v223, %v244
    %v253 = vmul.f32 %v227, %v244
    %v254 = vmul.f32 %v231, %v244
    %v255 = vmul.f32 %v235, %v244
    %v256 = vmul.f32 %v239, %v244
    %v257 = vadd.f32 %v181, %v245
    %v258 = vadd.f32 %v182, %v246
    %v259 = vadd.f32 %v183, %v247
    %v260 = vadd.f32 %v184, %v248
    %v261 = vadd.f32 %v185, %v249
    %v262 = vadd.f32 %v186, %v250
    %v263 = vadd.f32 %v187, %v251
    %v264 = vadd.f32 %v188, %v252
    %v265 = vadd.f32 %v189, %v253
    %v266 = vadd.f32 %v190, %v254
    %v267 = vadd.f32 %v191, %v255
    %v268 = vadd.f32 %v192, %v256
    %v269 = vld [vmem:[%s2] sm:$0x1]
    %v270 = vlaneseq
    %v271 = vshrl.u32 %v270, 7
    %v272 = vsub.s32 0, %v271
    %v273 = vrot.slane %v269, %v272
    %v274 = vadd.f32 %v257, %v273
    %v275 = vadd.f32 %v258, %v273
    %v276 = vadd.f32 %v259, %v273
    %v277 = vadd.f32 %v260, %v273
    %v278 = vadd.f32 %v261, %v273
    %v279 = vadd.f32 %v262, %v273
    %v280 = vadd.f32 %v263, %v273
    %v281 = vadd.f32 %v264, %v273
    %v282 = vld [vmem:[%s2 + $0x1] sm:$0x1]
    %v283 = vlaneseq
    %v284 = vshrl.u32 %v283, 7
    %v285 = vsub.s32 0, %v284
    %v286 = vrot.slane %v282, %v285
    %v287 = vadd.f32 %v265, %v286
    %v288 = vadd.f32 %v266, %v286
    %v289 = vadd.f32 %v267, %v286
    %v290 = vadd.f32 %v268, %v286
    %v291 = vmax.f32 %v274, 0.0
    %v292 = vmax.f32 %v275, 0.0
    %v293 = vmax.f32 %v276, 0.0
    %v294 = vmax.f32 %v277, 0.0
    %v295 = vmax.f32 %v278, 0.0
    %v296 = vmax.f32 %v279, 0.0
    %v297 = vmax.f32 %v280, 0.0
    %v298 = vmax.f32 %v281, 0.0
    %v299 = vmax.f32 %v287, 0.0
    %v300 = vmax.f32 %v288, 0.0
    %v301 = vmax.f32 %v289, 0.0
    %v302 = vmax.f32 %v290, 0.0
    %v303 = vld [vmem:[#allocation2 + $0x8] sm:$0xff]
    %v304 = vld [vmem:[#allocation2 + $0x10] sm:$0xff]
    %v305 = vld [vmem:[#allocation2 + $0x18] sm:$0xff]
    %v306 = vld [vmem:[#allocation2 + $0x20] sm:$0xff]
    %v307 = vld [vmem:[#allocation2 + $0x28] sm:$0xff]
    %v308 = vld [vmem:[#allocation2 + $0x30] sm:$0xff]
    %v309 = vld [vmem:[#allocation2 + $0x38] sm:$0xff]
    %v310 = vld [vmem:[#allocation2 + $0x40] sm:$0xff]
    %v311 = vld [vmem:[#allocation2 + $0x48] sm:$0xff]
    %v312 = vld [vmem:[#allocation2 + $0x50] sm:$0xff]
    %v313 = vld [vmem:[#allocation2 + $0x58] sm:$0xff]
    %v314 = vld [vmem:[#allocation2 + $0x60] sm:$0xff]
    %v315 = vld [vmem:[#allocation2 + $0x68] sm:$0xff]
    %v316 = vld [vmem:[#allocation2 + $0x70] sm:$0xff]
    %v317 = vld [vmem:[#allocation2 + $0x78] sm:$0xff]
    %v318 = vld [vmem:[#allocation2 + $0x80] sm:$0xff]
    %v319 = vld [vmem:[%s2 + $0x2] sm:$0x1]
    %v320 = vlaneseq
    %v321 = vshrl.u32 %v320, 7
    %v322 = vsub.s32 0, %v321
    %v323 = vrot.slane %v319, %v322
    %324 = vmatprep.subr.mxu0 0.0
    %325 = vmatpush1.msra.mxu0 %v318
    %326 = vmatprep.subr.mxu0 0.0
    %327 = vmatpush1.msra.mxu0 %v317
    %328 = vmatprep.subr.mxu0 0.0
    %329 = vmatpush1.msra.mxu0 %v316
    %330 = vmatprep.subr.mxu0 0.0
    %331 = vmatpush1.msra.mxu0 %v315
    %332 = vmatprep.subr.mxu0 0.0
    %333 = vmatpush1.msra.mxu0 %v314
    %334 = vmatprep.subr.mxu0 0.0
    %335 = vmatpush1.msra.mxu0 %v313
    %336 = vmatprep.subr.mxu0 0.0
    %337 = vmatpush1.msra.mxu0 %v312
    %338 = vmatprep.subr.mxu0 0.0
    %339 = vmatpush1.msra.mxu0 %v311
    %340 = vmatprep.subr.mxu0 0.0
    %341 = vmatpush1.msra.mxu0 %v310
    %342 = vmatprep.subr.mxu0 0.0
    %343 = vmatpush1.msra.mxu0 %v309
    %344 = vmatprep.subr.mxu0 0.0
    %345 = vmatpush1.msra.mxu0 %v308
    %346 = vmatprep.subr.mxu0 0.0
    %347 = vmatpush1.msra.mxu0 %v307
    %348 = vmatprep.subr.mxu0 0.0
    %349 = vmatpush1.msra.mxu0 %v306
    %350 = vmatprep.subr.mxu0 0.0
    %351 = vmatpush1.msra.mxu0 %v305
    %352 = vmatprep.subr.mxu0 0.0
    %353 = vmatpush1.msra.mxu0 %v304
    %354 = vmatprep.subr.mxu0 0.0
    %355 = vmatpush1.msra.mxu0 %v303
    %356 = vmatprep.subr.mxu0 0.0
    %357 = vmatpush2.msra.mxu0 0.0
    %358 = vmatprep.subr.mxu0 0.0
    %359 = vmatpush2.msra.mxu0 0.0
    %360 = vmatprep.subr.mxu0 0.0
    %361 = vmatpush2.msra.mxu0 0.0
    %362 = vmatprep.subr.mxu0 0.0
    %363 = vmatpush2.msra.mxu0 0.0
    %364 = vmatprep.subr.mxu0 0.0
    %365 = vmatpush2.msra.mxu0 0.0
    %366 = vmatprep.subr.mxu0 0.0
    %367 = vmatpush2.msra.mxu0 0.0
    %368 = vmatprep.subr.mxu0 0.0
    %369 = vmatpush2.msra.mxu0 0.0
    %370 = vmatprep.subr.mxu0 0.0
    %371 = vmatpush2.msra.mxu0 0.0
    %372 = vmatprep.subr.mxu0 0.0
    %373 = vmatpush2.msra.mxu0 0.0
    %374 = vmatprep.subr.mxu0 0.0
    %375 = vmatpush2.msra.mxu0 0.0
    %376 = vmatprep.subr.mxu0 0.0
    %377 = vmatpush2.msra.mxu0 0.0
    %378 = vmatprep.subr.mxu0 0.0
    %379 = vmatpush2.msra.mxu0 0.0
    %380 = vmatprep.subr.mxu0 0.0
    %381 = vmatpush2.msra.mxu0 0.0
    %382 = vmatprep.subr.mxu0 0.0
    %383 = vmatpush2.msra.mxu0 0.0
    %384 = vmatprep.subr.mxu0 0.0
    %385 = vmatpush2.msra.mxu0 0.0
    %386 = vmatprep.subr.mxu0 0.0
    %387 = vmatpush2.msra.mxu0 0.0
    %388 = vmatprep.mubr.f32.mxu0 0.0
    %389 = vmatmul.mubr.f32.gmra.mxu0 %v291
    %v390 = vpop.f32.mrf.mxu0
    %v391 = vadd.f32 %v323, %v390
    %v392 = vpop.f32.mrf.mxu0
    %393 = vmatprep.mubr.f32.mxu0 0.0
    %394 = vmatmul.mubr.f32.gmra.mxu0 %v292
    %v395 = vpop.f32.mrf.mxu0
    %v396 = vadd.f32 %v323, %v395
    %v397 = vpop.f32.mrf.mxu0
    %398 = vmatprep.mubr.f32.mxu0 0.0
    %399 = vmatmul.mubr.f32.gmra.mxu0 %v293
    %v400 = vpop.f32.mrf.mxu0
    %v401 = vadd.f32 %v323, %v400
    %v402 = vpop.f32.mrf.mxu0
    %403 = vmatprep.mubr.f32.mxu0 0.0
    %404 = vmatmul.mubr.f32.gmra.mxu0 %v294
    %v405 = vpop.f32.mrf.mxu0
    %v406 = vadd.f32 %v323, %v405
    %v407 = vpop.f32.mrf.mxu0
    %408 = vmatprep.mubr.f32.mxu0 0.0
    %409 = vmatmul.mubr.f32.gmra.mxu0 %v295
    %v410 = vpop.f32.mrf.mxu0
    %v411 = vadd.f32 %v323, %v410
    %v412 = vpop.f32.mrf.mxu0
    %413 = vmatprep.mubr.f32.mxu0 0.0
    %414 = vmatmul.mubr.f32.gmra.mxu0 %v296
    %v415 = vpop.f32.mrf.mxu0
    %v416 = vadd.f32 %v323, %v415
    %v417 = vpop.f32.mrf.mxu0
    %418 = vmatprep.mubr.f32.mxu0 0.0
    %419 = vmatmul.mubr.f32.gmra.mxu0 %v297
    %v420 = vpop.f32.mrf.mxu0
    %v421 = vadd.f32 %v323, %v420
    %v422 = vpop.f32.mrf.mxu0
    %423 = vmatprep.mubr.f32.mxu0 0.0
    %424 = vmatmul.mubr.f32.gmra.mxu0 %v298
    %v425 = vpop.f32.mrf.mxu0
    %v426 = vadd.f32 %v323, %v425
    %v427 = vpop.f32.mrf.mxu0
    %428 = vmatprep.mubr.f32.mxu0 0.0
    %429 = vmatmul.mubr.f32.gmra.mxu0 %v299
    %v430 = vpop.f32.mrf.mxu0
    %v431 = vadd.f32 %v323, %v430
    %v432 = vpop.f32.mrf.mxu0
    %433 = vmatprep.mubr.f32.mxu0 0.0
    %434 = vmatmul.mubr.f32.gmra.mxu0 %v300
    %v435 = vpop.f32.mrf.mxu0
    %v436 = vadd.f32 %v323, %v435
    %v437 = vpop.f32.mrf.mxu0
    %438 = vmatprep.mubr.f32.mxu0 0.0
    %439 = vmatmul.mubr.f32.gmra.mxu0 %v301
    %v440 = vpop.f32.mrf.mxu0
    %v441 = vadd.f32 %v323, %v440
    %v442 = vpop.f32.mrf.mxu0
    %443 = vmatprep.mubr.f32.mxu0 0.0
    %444 = vmatmul.mubr.f32.gmra.mxu0 %v302
    %v445 = vpop.f32.mrf.mxu0
    %v446 = vadd.f32 %v323, %v445
    %v447 = vpop.f32.mrf.mxu0
    %448 = vdwg.mxu0
    %v449 = vmax.f32 %v391, 0.0
    %v450 = vmax.f32 %v396, 0.0
    %v451 = vmax.f32 %v401, 0.0
    %v452 = vmax.f32 %v406, 0.0
    %v453 = vmax.f32 %v411, 0.0
    %v454 = vmax.f32 %v416, 0.0
    %v455 = vmax.f32 %v421, 0.0
    %v456 = vmax.f32 %v426, 0.0
    %v457 = vmax.f32 %v431, 0.0
    %v458 = vmax.f32 %v436, 0.0
    %v459 = vmax.f32 %v441, 0.0
    %v460 = vmax.f32 %v446, 0.0
    %v461 = vld [vmem:[#allocation2 + $0x88] sm:$0xff]
    %v462 = vld [vmem:[#allocation2 + $0x90] sm:$0xff]
    %v463 = vld [vmem:[#allocation2 + $0x98] sm:$0xff]
    %v464 = vld [vmem:[#allocation2 + $0xa0] sm:$0xff]
    %v465 = vld [vmem:[#allocation2 + $0xa8] sm:$0xff]
    %v466 = vld [vmem:[#allocation2 + $0xb0] sm:$0xff]
    %v467 = vld [vmem:[#allocation2 + $0xb8] sm:$0xff]
    %v468 = vld [vmem:[#allocation2 + $0xc0] sm:$0xff]
    %v469 = vld [vmem:[#allocation2 + $0xc8] sm:$0xff]
    %v470 = vld [vmem:[#allocation2 + $0xd0] sm:$0xff]
    %v471 = vld [vmem:[#allocation2 + $0xd8] sm:$0xff]
    %v472 = vld [vmem:[#allocation2 + $0xe0] sm:$0xff]
    %v473 = vld [vmem:[#allocation2 + $0xe8] sm:$0xff]
    %v474 = vld [vmem:[#allocation2 + $0xf0] sm:$0xff]
    %v475 = vld [vmem:[#allocation2 + $0xf8] sm:$0xff]
    %v476 = vld [vmem:[#allocation2 + $0x100] sm:$0xff]
    %v477 = vld [vmem:[%s2 + $0x3] sm:$0x1]
    %v478 = vlaneseq
    %v479 = vshrl.u32 %v478, 7
    %v480 = vsub.s32 0, %v479
    %v481 = vrot.slane %v477, %v480
    %482 = vmatprep.subr.mxu0 0.0
    %483 = vmatpush1.msra.mxu0 %v476
    %484 = vmatprep.subr.mxu0 0.0
    %485 = vmatpush1.msra.mxu0 %v475
    %486 = vmatprep.subr.mxu0 0.0
    %487 = vmatpush1.msra.mxu0 %v474
    %488 = vmatprep.subr.mxu0 0.0
    %489 = vmatpush1.msra.mxu0 %v473
    %490 = vmatprep.subr.mxu0 0.0
    %491 = vmatpush1.msra.mxu0 %v472
    %492 = vmatprep.subr.mxu0 0.0
    %493 = vmatpush1.msra.mxu0 %v471
    %494 = vmatprep.subr.mxu0 0.0
    %495 = vmatpush1.msra.mxu0 %v470
    %496 = vmatprep.subr.mxu0 0.0
    %497 = vmatpush1.msra.mxu0 %v469
    %498 = vmatprep.subr.mxu0 0.0
    %499 = vmatpush1.msra.mxu0 %v468
    %500 = vmatprep.subr.mxu0 0.0
    %501 = vmatpush1.msra.mxu0 %v467
    %502 = vmatprep.subr.mxu0 0.0
    %503 = vmatpush1.msra.mxu0 %v466
    %504 = vmatprep.subr.mxu0 0.0
    %505 = vmatpush1.msra.mxu0 %v465
    %506 = vmatprep.subr.mxu0 0.0
    %507 = vmatpush1.msra.mxu0 %v464
    %508 = vmatprep.subr.mxu0 0.0
    %509 = vmatpush1.msra.mxu0 %v463
    %510 = vmatprep.subr.mxu0 0.0
    %511 = vmatpush1.msra.mxu0 %v462
    %512 = vmatprep.subr.mxu0 0.0
    %513 = vmatpush1.msra.mxu0 %v461
    %514 = vmatprep.subr.mxu0 0.0
    %515 = vmatpush2.msra.mxu0 0.0
    %516 = vmatprep.subr.mxu0 0.0
    %517 = vmatpush2.msra.mxu0 0.0
    %518 = vmatprep.subr.mxu0 0.0
    %519 = vmatpush2.msra.mxu0 0.0
    %520 = vmatprep.subr.mxu0 0.0
    %521 = vmatpush2.msra.mxu0 0.0
    %522 = vmatprep.subr.mxu0 0.0
    %523 = vmatpush2.msra.mxu0 0.0
    %524 = vmatprep.subr.mxu0 0.0
    %525 = vmatpush2.msra.mxu0 0.0
    %526 = vmatprep.subr.mxu0 0.0
    %527 = vmatpush2.msra.mxu0 0.0
    %528 = vmatprep.subr.mxu0 0.0
    %529 = vmatpush2.msra.mxu0 0.0
    %530 = vmatprep.subr.mxu0 0.0
    %531 = vmatpush2.msra.mxu0 0.0
    %532 = vmatprep.subr.mxu0 0.0
    %533 = vmatpush2.msra.mxu0 0.0
    %534 = vmatprep.subr.mxu0 0.0
    %535 = vmatpush2.msra.mxu0 0.0
    %536 = vmatprep.subr.mxu0 0.0
    %537 = vmatpush2.msra.mxu0 0.0
    %538 = vmatprep.subr.mxu0 0.0
    %539 = vmatpush2.msra.mxu0 0.0
    %540 = vmatprep.subr.mxu0 0.0
    %541 = vmatpush2.msra.mxu0 0.0
    %542 = vmatprep.subr.mxu0 0.0
    %543 = vmatpush2.msra.mxu0 0.0
    %544 = vmatprep.subr.mxu0 0.0
    %545 = vmatpush2.msra.mxu0 0.0
    %546 = vmatprep.mubr.f32.mxu0 0.0
    %547 = vmatmul.mubr.f32.gmra.mxu0 %v449
    %v548 = vpop.f32.mrf.mxu0
    %v549 = vadd.f32 %v481, %v548
    %v550 = vpop.f32.mrf.mxu0
    %551 = vmatprep.mubr.f32.mxu0 0.0
    %552 = vmatmul.mubr.f32.gmra.mxu0 %v450
    %v553 = vpop.f32.mrf.mxu0
    %v554 = vadd.f32 %v481, %v553
    %v555 = vpop.f32.mrf.mxu0
    %556 = vmatprep.mubr.f32.mxu0 0.0
    %557 = vmatmul.mubr.f32.gmra.mxu0 %v451
    %v558 = vpop.f32.mrf.mxu0
    %v559 = vadd.f32 %v481, %v558
    %v560 = vpop.f32.mrf.mxu0
    %561 = vmatprep.mubr.f32.mxu0 0.0
    %562 = vmatmul.mubr.f32.gmra.mxu0 %v452
    %v563 = vpop.f32.mrf.mxu0
    %v564 = vadd.f32 %v481, %v563
    %v565 = vpop.f32.mrf.mxu0
    %566 = vmatprep.mubr.f32.mxu0 0.0
    %567 = vmatmul.mubr.f32.gmra.mxu0 %v453
    %v568 = vpop.f32.mrf.mxu0
    %v569 = vadd.f32 %v481, %v568
    %v570 = vpop.f32.mrf.mxu0
    %571 = vmatprep.mubr.f32.mxu0 0.0
    %572 = vmatmul.mubr.f32.gmra.mxu0 %v454
    %v573 = vpop.f32.mrf.mxu0
    %v574 = vadd.f32 %v481, %v573
    %v575 = vpop.f32.mrf.mxu0
    %576 = vmatprep.mubr.f32.mxu0 0.0
    %577 = vmatmul.mubr.f32.gmra.mxu0 %v455
    %v578 = vpop.f32.mrf.mxu0
    %v579 = vadd.f32 %v481, %v578
    %v580 = vpop.f32.mrf.mxu0
    %581 = vmatprep.mubr.f32.mxu0 0.0
    %582 = vmatmul.mubr.f32.gmra.mxu0 %v456
    %v583 = vpop.f32.mrf.mxu0
    %v584 = vadd.f32 %v481, %v583
    %v585 = vpop.f32.mrf.mxu0
    %586 = vmatprep.mubr.f32.mxu0 0.0
    %587 = vmatmul.mubr.f32.gmra.mxu0 %v457
    %v588 = vpop.f32.mrf.mxu0
    %v589 = vadd.f32 %v481, %v588
    %v590 = vpop.f32.mrf.mxu0
    %591 = vmatprep.mubr.f32.mxu0 0.0
    %592 = vmatmul.mubr.f32.gmra.mxu0 %v458
    %v593 = vpop.f32.mrf.mxu0
    %v594 = vadd.f32 %v481, %v593
    %v595 = vpop.f32.mrf.mxu0
    %596 = vmatprep.mubr.f32.mxu0 0.0
    %597 = vmatmul.mubr.f32.gmra.mxu0 %v459
    %v598 = vpop.f32.mrf.mxu0
    %v599 = vadd.f32 %v481, %v598
    %v600 = vpop.f32.mrf.mxu0
    %601 = vmatprep.mubr.f32.mxu0 0.0
    %602 = vmatmul.mubr.f32.gmra.mxu0 %v460
    %v603 = vpop.f32.mrf.mxu0
    %v604 = vadd.f32 %v481, %v603
    %v605 = vpop.f32.mrf.mxu0
    %606 = vdwg.mxu0
    %v607 = vmax.f32 %v549, %v569
    %v608 = vmax.f32 %v554, %v574
    %v609 = vmax.f32 %v559, %v579
    %v610 = vmax.f32 %v564, %v584
    %v611 = vmax.f32 %v607, %v608
    %v612 = vmax.f32 %v609, %v610
    %v613 = vmax.f32 %v611, %v612
    %v614 = vrot.slane %v613, 4
    %v615 = vmax.f32 %v613, %v614
    %v616 = vrot.slane %v615, 2
    %v617 = vmax.f32 %v615, %v616
    %v618 = vrot.slane %v617, 1
    %v619 = vmax.f32 %v617, %v618
    %v620 = vmax.f32 %v589, %v594
    %v621 = vmax.f32 %v599, %v604
    %v622 = vmax.f32 %v620, %v621
    %v623 = vrot.slane %v622, 4
    %v624 = vmax.f32 %v622, %v623
    %v625 = vrot.slane %v624, 2
    %v626 = vmax.f32 %v624, %v625
    %v627 = vrot.slane %v626, 1
    %v628 = vmax.f32 %v626, %v627
    %v629 = vld [vmem:[#allocation2 + $0x108] sm:$0xff]
    %v630 = vld [vmem:[#allocation2 + $0x110] sm:$0xff]
    %v631 = vld [vmem:[#allocation2 + $0x118] sm:$0xff]
    %v632 = vld [vmem:[#allocation2 + $0x120] sm:$0xff]
    %v633 = vld [vmem:[#allocation2 + $0x128] sm:$0xff]
    %v634 = vld [vmem:[#allocation2 + $0x130] sm:$0xff]
    %v635 = vld [vmem:[#allocation2 + $0x138] sm:$0xff]
    %v636 = vld [vmem:[#allocation2 + $0x140] sm:$0xff]
    %v637 = vld [vmem:[#allocation2 + $0x148] sm:$0xff]
    %v638 = vld [vmem:[#allocation2 + $0x150] sm:$0xff]
    %v639 = vld [vmem:[#allocation2 + $0x158] sm:$0xff]
    %v640 = vld [vmem:[#allocation2 + $0x160] sm:$0xff]
    %v641 = vld [vmem:[#allocation2 + $0x168] sm:$0xff]
    %v642 = vld [vmem:[#allocation2 + $0x170] sm:$0xff]
    %v643 = vld [vmem:[#allocation2 + $0x178] sm:$0xff]
    %v644 = vld [vmem:[#allocation2 + $0x180] sm:$0xff]
    %v645 = vld [vmem:[#allocation2 + $0x188] sm:$0xff]
    %v646 = vld [vmem:[#allocation2 + $0x190] sm:$0xff]
    %v647 = vld [vmem:[#allocation2 + $0x198] sm:$0xff]
    %v648 = vld [vmem:[#allocation2 + $0x1a0] sm:$0xff]
    %v649 = vld [vmem:[#allocation2 + $0x1a8] sm:$0xff]
    %v650 = vld [vmem:[#allocation2 + $0x1b0] sm:$0xff]
    %v651 = vld [vmem:[#allocation2 + $0x1b8] sm:$0xff]
    %v652 = vld [vmem:[#allocation2 + $0x1c0] sm:$0xff]
    %v653 = vld [vmem:[#allocation2 + $0x1c8] sm:$0xff]
    %v654 = vld [vmem:[#allocation2 + $0x1d0] sm:$0xff]
    %v655 = vld [vmem:[#allocation2 + $0x1d8] sm:$0xff]
    %v656 = vld [vmem:[#allocation2 + $0x1e0] sm:$0xff]
    %v657 = vld [vmem:[#allocation2 + $0x1e8] sm:$0xff]
    %v658 = vld [vmem:[#allocation2 + $0x1f0] sm:$0xff]
    %v659 = vld [vmem:[#allocation2 + $0x1f8] sm:$0xff]
    %v660 = vld [vmem:[#allocation2 + $0x200] sm:$0xff]
    %v661 = vld [vmem:[%s2 + $0x4] sm:$0x1]
    %662 = vmatprep.subr.mxu0 0.0
    %663 = vmatpush1.msra.mxu0 %v644
    %664 = vmatprep.subr.mxu0 0.0
    %665 = vmatpush1.msra.mxu0 %v643
    %666 = vmatprep.subr.mxu0 0.0
    %667 = vmatpush1.msra.mxu0 %v642
    %668 = vmatprep.subr.mxu0 0.0
    %669 = vmatpush1.msra.mxu0 %v641
    %670 = vmatprep.subr.mxu0 0.0
    %671 = vmatpush1.msra.mxu0 %v640
    %672 = vmatprep.subr.mxu0 0.0
    %673 = vmatpush1.msra.mxu0 %v639
    %674 = vmatprep.subr.mxu0 0.0
    %675 = vmatpush1.msra.mxu0 %v638
    %676 = vmatprep.subr.mxu0 0.0
    %677 = vmatpush1.msra.mxu0 %v637
    %678 = vmatprep.subr.mxu0 0.0
    %679 = vmatpush1.msra.mxu0 %v636
    %680 = vmatprep.subr.mxu0 0.0
    %681 = vmatpush1.msra.mxu0 %v635
    %682 = vmatprep.subr.mxu0 0.0
    %683 = vmatpush1.msra.mxu0 %v634
    %684 = vmatprep.subr.mxu0 0.0
    %685 = vmatpush1.msra.mxu0 %v633
    %686 = vmatprep.subr.mxu0 0.0
    %687 = vmatpush1.msra.mxu0 %v632
    %688 = vmatprep.subr.mxu0 0.0
    %689 = vmatpush1.msra.mxu0 %v631
    %690 = vmatprep.subr.mxu0 0.0
    %691 = vmatpush1.msra.mxu0 %v630
    %692 = vmatprep.subr.mxu0 0.0
    %693 = vmatpush1.msra.mxu0 %v629
    %694 = vmatprep.subr.mxu0 0.0
    %695 = vmatpush2.msra.mxu0 %v660
    %696 = vmatprep.subr.mxu0 0.0
    %697 = vmatpush2.msra.mxu0 %v659
    %698 = vmatprep.subr.mxu0 0.0
    %699 = vmatpush2.msra.mxu0 %v658
    %700 = vmatprep.subr.mxu0 0.0
    %701 = vmatpush2.msra.mxu0 %v657
    %702 = vmatprep.subr.mxu0 0.0
    %703 = vmatpush2.msra.mxu0 %v656
    %704 = vmatprep.subr.mxu0 0.0
    %705 = vmatpush2.msra.mxu0 %v655
    %706 = vmatprep.subr.mxu0 0.0
    %707 = vmatpush2.msra.mxu0 %v654
    %708 = vmatprep.subr.mxu0 0.0
    %709 = vmatpush2.msra.mxu0 %v653
    %710 = vmatprep.subr.mxu0 0.0
    %711 = vmatpush2.msra.mxu0 %v652
    %712 = vmatprep.subr.mxu0 0.0
    %713 = vmatpush2.msra.mxu0 %v651
    %714 = vmatprep.subr.mxu0 0.0
    %715 = vmatpush2.msra.mxu0 %v650
    %716 = vmatprep.subr.mxu0 0.0
    %717 = vmatpush2.msra.mxu0 %v649
    %718 = vmatprep.subr.mxu0 0.0
    %719 = vmatpush2.msra.mxu0 %v648
    %720 = vmatprep.subr.mxu0 0.0
    %721 = vmatpush2.msra.mxu0 %v647
    %722 = vmatprep.subr.mxu0 0.0
    %723 = vmatpush2.msra.mxu0 %v646
    %724 = vmatprep.subr.mxu0 0.0
    %725 = vmatpush2.msra.mxu0 %v645
    %726 = vmatprep.mubr.f32.mxu0 %v628
    %727 = vmatmul.mubr.f32.gmra.mxu0 %v619
    %v728 = vpop.f32.mrf.mxu0
    %v729 = vadd.f32 %v661, %v728
    %v730 = vpop.f32.mrf.mxu0
    %731 = vdwg.mxu0
    %v732 = vmax.f32 %v729, 0.0
    %v733 = vld [vmem:[#allocation2 + $0x208] sm:$0xff]
    %v734 = vld [vmem:[#allocation2 + $0x210] sm:$0xff]
    %v735 = vld [vmem:[#allocation2 + $0x218] sm:$0xff]
    %v736 = vld [vmem:[#allocation2 + $0x220] sm:$0xff]
    %v737 = vld [vmem:[#allocation2 + $0x228] sm:$0xff]
    %v738 = vld [vmem:[#allocation2 + $0x230] sm:$0xff]
    %v739 = vld [vmem:[#allocation2 + $0x238] sm:$0xff]
    %v740 = vld [vmem:[#allocation2 + $0x240] sm:$0xff]
    %v741 = vld [vmem:[#allocation2 + $0x248] sm:$0xff]
    %v742 = vld [vmem:[#allocation2 + $0x250] sm:$0xff]
    %v743 = vld [vmem:[#allocation2 + $0x258] sm:$0xff]
    %v744 = vld [vmem:[#allocation2 + $0x260] sm:$0xff]
    %v745 = vld [vmem:[#allocation2 + $0x268] sm:$0xff]
    %v746 = vld [vmem:[#allocation2 + $0x270] sm:$0xff]
    %v747 = vld [vmem:[#allocation2 + $0x278] sm:$0xff]
    %v748 = vld [vmem:[#allocation2 + $0x280] sm:$0xff]
    %v749 = vld [vmem:[%s2 + $0x5] sm:$0x1]
    %750 = vmatprep.subr.mxu0 0.0
    %751 = vmatpush1.msra.mxu0 %v748
    %752 = vmatprep.subr.mxu0 0.0
    %753 = vmatpush1.msra.mxu0 %v747
    %754 = vmatprep.subr.mxu0 0.0
    %755 = vmatpush1.msra.mxu0 %v746
    %756 = vmatprep.subr.mxu0 0.0
    %757 = vmatpush1.msra.mxu0 %v745
    %758 = vmatprep.subr.mxu0 0.0
    %759 = vmatpush1.msra.mxu0 %v744
    %760 = vmatprep.subr.mxu0 0.0
    %761 = vmatpush1.msra.mxu0 %v743
    %762 = vmatprep.subr.mxu0 0.0
    %763 = vmatpush1.msra.mxu0 %v742
    %764 = vmatprep.subr.mxu0 0.0
    %765 = vmatpush1.msra.mxu0 %v741
    %766 = vmatprep.subr.mxu0 0.0
    %767 = vmatpush1.msra.mxu0 %v740
    %768 = vmatprep.subr.mxu0 0.0
    %769 = vmatpush1.msra.mxu0 %v739
    %770 = vmatprep.subr.mxu0 0.0
    %771 = vmatpush1.msra.mxu0 %v738
    %772 = vmatprep.subr.mxu0 0.0
    %773 = vmatpush1.msra.mxu0 %v737
    %774 = vmatprep.subr.mxu0 0.0
    %775 = vmatpush1.msra.mxu0 %v736
    %776 = vmatprep.subr.mxu0 0.0
    %777 = vmatpush1.msra.mxu0 %v735
    %778 = vmatprep.subr.mxu0 0.0
    %779 = vmatpush1.msra.mxu0 %v734
    %780 = vmatprep.subr.mxu0 0.0
    %781 = vmatpush1.msra.mxu0 %v733
    %782 = vmatprep.subr.mxu0 0.0
    %783 = vmatpush2.msra.mxu0 0.0
    %784 = vmatprep.subr.mxu0 0.0
    %785 = vmatpush2.msra.mxu0 0.0
    %786 = vmatprep.subr.mxu0 0.0
    %787 = vmatpush2.msra.mxu0 0.0
    %788 = vmatprep.subr.mxu0 0.0
    %789 = vmatpush2.msra.mxu0 0.0
    %790 = vmatprep.subr.mxu0 0.0
    %791 = vmatpush2.msra.mxu0 0.0
    %792 = vmatprep.subr.mxu0 0.0
    %793 = vmatpush2.msra.mxu0 0.0
    %794 = vmatprep.subr.mxu0 0.0
    %795 = vmatpush2.msra.mxu0 0.0
    %796 = vmatprep.subr.mxu0 0.0
    %797 = vmatpush2.msra.mxu0 0.0
    %798 = vmatprep.subr.mxu0 0.0
    %799 = vmatpush2.msra.mxu0 0.0
    %800 = vmatprep.subr.mxu0 0.0
    %801 = vmatpush2.msra.mxu0 0.0
    %802 = vmatprep.subr.mxu0 0.0
    %803 = vmatpush2.msra.mxu0 0.0
    %804 = vmatprep.subr.mxu0 0.0
    %805 = vmatpush2.msra.mxu0 0.0
    %806 = vmatprep.subr.mxu0 0.0
    %807 = vmatpush2.msra.mxu0 0.0
    %808 = vmatprep.subr.mxu0 0.0
    %809 = vmatpush2.msra.mxu0 0.0
    %810 = vmatprep.subr.mxu0 0.0
    %811 = vmatpush2.msra.mxu0 0.0
    %812 = vmatprep.subr.mxu0 0.0
    %813 = vmatpush2.msra.mxu0 0.0
    %814 = vmatprep.mubr.f32.mxu0 0.0
    %815 = vmatmul.mubr.f32.gmra.mxu0 %v732
    %v816 = vpop.f32.mrf.mxu0
    %v817 = vadd.f32 %v749, %v816
    %v818 = vpop.f32.mrf.mxu0
    %819 = vdwg.mxu0
    %v820 = vld [vmem:[%s0 + $0x60] sm:$0x1]
    %v821 = vld [vmem:[#allocation2 + $0x288] sm:$0xff]
    %v822 = vld [vmem:[#allocation2 + $0x290] sm:$0xff]
    %v823 = vld [vmem:[#allocation2 + $0x298] sm:$0xff]
    %v824 = vld [vmem:[#allocation2 + $0x2a0] sm:$0xff]
    %v825 = vld [vmem:[#allocation2 + $0x2a8] sm:$0xff]
    %v826 = vld [vmem:[#allocation2 + $0x2b0] sm:$0xff]
    %v827 = vld [vmem:[#allocation2 + $0x2b8] sm:$0xff]
    %v828 = vld [vmem:[#allocation2 + $0x2c0] sm:$0xff]
    %v829 = vld [vmem:[#allocation2 + $0x2c8] sm:$0xff]
    %v830 = vld [vmem:[#allocation2 + $0x2d0] sm:$0xff]
    %v831 = vld [vmem:[#allocation2 + $0x2d8] sm:$0xff]
    %v832 = vld [vmem:[#allocation2 + $0x2e0] sm:$0xff]
    %v833 = vld [vmem:[#allocation2 + $0x2e8] sm:$0xff]
    %v834 = vld [vmem:[#allocation2 + $0x2f0] sm:$0xff]
    %v835 = vld [vmem:[#allocation2 + $0x2f8] sm:$0xff]
    %v836 = vld [vmem:[#allocation2 + $0x300] sm:$0xff]
    %v837 = vld [vmem:[#allocation2 + $0x308] sm:$0xff]
    %v838 = vld [vmem:[#allocation2 + $0x310] sm:$0xff]
    %v839 = vld [vmem:[#allocation2 + $0x318] sm:$0xff]
    %v840 = vld [vmem:[#allocation2 + $0x320] sm:$0xff]
    %v841 = vld [vmem:[#allocation2 + $0x328] sm:$0xff]
    %v842 = vld [vmem:[#allocation2 + $0x330] sm:$0xff]
    %v843 = vld [vmem:[#allocation2 + $0x338] sm:$0xff]
    %v844 = vld [vmem:[#allocation2 + $0x340] sm:$0xff]
    %845 = vmatprep.subr.mxu0 0.0
    %846 = vmatpush1.msra.mxu0 %v844
    %847 = vmatprep.subr.mxu0 0.0
    %848 = vmatpush1.msra.mxu0 %v843
    %849 = vmatprep.subr.mxu0 0.0
    %850 = vmatpush1.msra.mxu0 %v842
    %851 = vmatprep.subr.mxu0 0.0
    %852 = vmatpush1.msra.mxu0 %v841
    %853 = vmatprep.subr.mxu0 0.0
    %854 = vmatpush1.msra.mxu0 %v840
    %855 = vmatprep.subr.mxu0 0.0
    %856 = vmatpush1.msra.mxu0 %v839
    %857 = vmatprep.subr.mxu0 0.0
    %858 = vmatpush1.msra.mxu0 %v838
    %859 = vmatprep.subr.mxu0 0.0
    %860 = vmatpush1.msra.mxu0 %v837
    %861 = vmatprep.subr.mxu0 0.0
    %862 = vmatpush1.msra.mxu0 %v836
    %863 = vmatprep.subr.mxu0 0.0
    %864 = vmatpush1.msra.mxu0 %v835
    %865 = vmatprep.subr.mxu0 0.0
    %866 = vmatpush1.msra.mxu0 %v834
    %867 = vmatprep.subr.mxu0 0.0
    %868 = vmatpush1.msra.mxu0 %v833
    %869 = vmatprep.subr.mxu0 0.0
    %870 = vmatpush1.msra.mxu0 %v832
    %871 = vmatprep.subr.mxu0 0.0
    %872 = vmatpush1.msra.mxu0 %v831
    %873 = vmatprep.subr.mxu0 0.0
    %874 = vmatpush1.msra.mxu0 %v830
    %875 = vmatprep.subr.mxu0 0.0
    %876 = vmatpush1.msra.mxu0 %v829
    %877 = vmatprep.subr.mxu0 0.0
    %878 = vmatpush2.msra.mxu0 0.0
    %879 = vmatprep.subr.mxu0 0.0
    %880 = vmatpush2.msra.mxu0 0.0
    %881 = vmatprep.subr.mxu0 0.0
    %882 = vmatpush2.msra.mxu0 0.0
    %883 = vmatprep.subr.mxu0 0.0
    %884 = vmatpush2.msra.mxu0 0.0
    %885 = vmatprep.subr.mxu0 0.0
    %886 = vmatpush2.msra.mxu0 0.0
    %887 = vmatprep.subr.mxu0 0.0
    %888 = vmatpush2.msra.mxu0 0.0
    %889 = vmatprep.subr.mxu0 0.0
    %890 = vmatpush2.msra.mxu0 0.0
    %891 = vmatprep.subr.mxu0 0.0
    %892 = vmatpush2.msra.mxu0 0.0
    %893 = vmatprep.subr.mxu0 0.0
    %894 = vmatpush2.msra.mxu0 0.0
    %895 = vmatprep.subr.mxu0 0.0
    %896 = vmatpush2.msra.mxu0 0.0
    %897 = vmatprep.subr.mxu0 0.0
    %898 = vmatpush2.msra.mxu0 0.0
    %899 = vmatprep.subr.mxu0 0.0
    %900 = vmatpush2.msra.mxu0 0.0
    %901 = vmatprep.subr.mxu0 0.0
    %902 = vmatpush2.msra.mxu0 0.0
    %903 = vmatprep.subr.mxu0 0.0
    %904 = vmatpush2.msra.mxu0 0.0
    %905 = vmatprep.subr.mxu0 0.0
    %906 = vmatpush2.msra.mxu0 0.0
    %907 = vmatprep.subr.mxu0 0.0
    %908 = vmatpush2.msra.mxu0 0.0
    %909 = vmatprep.mubr.f32.mxu0 0.0
    %910 = vmatmul.mubr.f32.gmra.mxu0 %v817
    %v911 = vpop.f32.mrf.mxu0
    %v912 = vadd.f32 0.0, %v911
    %v913 = vpop.f32.mrf.mxu0
    %914 = vdwg.mxu0
    %vm915 = vcmask 523264
    %v917 = vsel %vm915, %v820, 0
    %919 = vmatprep.subr.mxu0 0.0
    %920 = vmatpush1.msra.mxu0 0.0
    %921 = vmatprep.subr.mxu0 0.0
    %922 = vmatpush1.msra.mxu0 0.0
    %923 = vmatprep.subr.mxu0 0.0
    %924 = vmatpush1.msra.mxu0 0.0
    %925 = vmatprep.subr.mxu0 0.0
    %926 = vmatpush1.msra.mxu0 0.0
    %927 = vmatprep.subr.mxu0 0.0
    %928 = vmatpush1.msra.mxu0 0.0
    %929 = vmatprep.subr.mxu0 0.0
    %930 = vmatpush1.msra.mxu0 0.0
    %931 = vmatprep.subr.mxu0 0.0
    %932 = vmatpush1.msra.mxu0 0.0
    %933 = vmatprep.subr.mxu0 0.0
    %934 = vmatpush1.msra.mxu0 0.0
    %935 = vmatprep.subr.mxu0 0.0
    %936 = vmatpush1.msra.mxu0 %v828
    %937 = vmatprep.subr.mxu0 0.0
    %938 = vmatpush1.msra.mxu0 %v827
    %939 = vmatprep.subr.mxu0 0.0
    %940 = vmatpush1.msra.mxu0 %v826
    %941 = vmatprep.subr.mxu0 0.0
    %942 = vmatpush1.msra.mxu0 %v825
    %943 = vmatprep.subr.mxu0 0.0
    %944 = vmatpush1.msra.mxu0 %v824
    %945 = vmatprep.subr.mxu0 0.0
    %946 = vmatpush1.msra.mxu0 %v823
    %947 = vmatprep.subr.mxu0 0.0
    %948 = vmatpush1.msra.mxu0 %v822
    %949 = vmatprep.subr.mxu0 0.0
    %950 = vmatpush1.msra.mxu0 %v821
    %951 = vmatprep.subr.mxu0 0.0
    %952 = vmatpush2.msra.mxu0 0.0
    %953 = vmatprep.subr.mxu0 0.0
    %954 = vmatpush2.msra.mxu0 0.0
    %955 = vmatprep.subr.mxu0 0.0
    %956 = vmatpush2.msra.mxu0 0.0
    %957 = vmatprep.subr.mxu0 0.0
    %958 = vmatpush2.msra.mxu0 0.0
    %959 = vmatprep.subr.mxu0 0.0
    %960 = vmatpush2.msra.mxu0 0.0
    %961 = vmatprep.subr.mxu0 0.0
    %962 = vmatpush2.msra.mxu0 0.0
    %963 = vmatprep.subr.mxu0 0.0
    %964 = vmatpush2.msra.mxu0 0.0
    %965 = vmatprep.subr.mxu0 0.0
    %966 = vmatpush2.msra.mxu0 0.0
    %967 = vmatprep.subr.mxu0 0.0
    %968 = vmatpush2.msra.mxu0 0.0
    %969 = vmatprep.subr.mxu0 0.0
    %970 = vmatpush2.msra.mxu0 0.0
    %971 = vmatprep.subr.mxu0 0.0
    %972 = vmatpush2.msra.mxu0 0.0
    %973 = vmatprep.subr.mxu0 0.0
    %974 = vmatpush2.msra.mxu0 0.0
    %975 = vmatprep.subr.mxu0 0.0
    %976 = vmatpush2.msra.mxu0 0.0
    %977 = vmatprep.subr.mxu0 0.0
    %978 = vmatpush2.msra.mxu0 0.0
    %979 = vmatprep.subr.mxu0 0.0
    %980 = vmatpush2.msra.mxu0 0.0
    %981 = vmatprep.subr.mxu0 0.0
    %982 = vmatpush2.msra.mxu0 0.0
    %983 = vmatprep.mubr.f32.mxu0 0.0
    %984 = vmatmul.mubr.f32.gmra.mxu0 %v917
    %v985 = vpop.f32.mrf.mxu0
    %v986 = vadd.f32 %v912, %v985
    %v987 = vpop.f32.mrf.mxu0
    %988 = vdwg.mxu0
    %v989 = vld [vmem:[%s2 + $0x6] sm:$0x1]
    %v990 = vadd.f32 %v986, %v989
    %vm991 = vcmp.gt.f32.partialorder %v990, 0.0
    %v992 = vmin.f32 %v990, 0.0
    %v993 = vmul.f32 %v992, 1.442695
    %v994 = vpow.pop %v993
    %v995 = vsub.f32 %v994, 1.0
    %v996 = vsel %vm991, %v990, %v995
    %v997 = vld [vmem:[#allocation2 + $0x348] sm:$0xff]
    %v998 = vld [vmem:[#allocation2 + $0x350] sm:$0xff]
    %v999 = vld [vmem:[#allocation2 + $0x358] sm:$0xff]
    %v1000 = vld [vmem:[#allocation2 + $0x360] sm:$0xff]
    %v1001 = vld [vmem:[#allocation2 + $0x368] sm:$0xff]
    %v1002 = vld [vmem:[#allocation2 + $0x370] sm:$0xff]
    %v1003 = vld [vmem:[#allocation2 + $0x378] sm:$0xff]
    %v1004 = vld [vmem:[#allocation2 + $0x380] sm:$0xff]
    %v1005 = vld [vmem:[#allocation2 + $0x388] sm:$0xff]
    %v1006 = vld [vmem:[#allocation2 + $0x390] sm:$0xff]
    %v1007 = vld [vmem:[#allocation2 + $0x398] sm:$0xff]
    %v1008 = vld [vmem:[#allocation2 + $0x3a0] sm:$0xff]
    %v1009 = vld [vmem:[#allocation2 + $0x3a8] sm:$0xff]
    %v1010 = vld [vmem:[#allocation2 + $0x3b0] sm:$0xff]
    %v1011 = vld [vmem:[#allocation2 + $0x3b8] sm:$0xff]
    %v1012 = vld [vmem:[#allocation2 + $0x3c0] sm:$0xff]
    %v1013 = vld [vmem:[#allocation2 + $0x3c8] sm:$0xff]
    %v1014 = vld [vmem:[#allocation2 + $0x3d0] sm:$0xff]
    %v1015 = vld [vmem:[#allocation2 + $0x3d8] sm:$0xff]
    %v1016 = vld [vmem:[#allocation2 + $0x3e0] sm:$0xff]
    %v1017 = vld [vmem:[#allocation2 + $0x3e8] sm:$0xff]
    %v1018 = vld [vmem:[#allocation2 + $0x3f0] sm:$0xff]
    %v1019 = vld [vmem:[#allocation2 + $0x3f8] sm:$0xff]
    %v1020 = vld [vmem:[#allocation2 + $0x400] sm:$0xff]
    %1021 = vmatprep.subr.mxu0 0.0
    %1022 = vmatpush1.msra.mxu0 %v1020
    %1023 = vmatprep.subr.mxu0 0.0
    %1024 = vmatpush1.msra.mxu0 %v1019
    %1025 = vmatprep.subr.mxu0 0.0
    %1026 = vmatpush1.msra.mxu0 %v1018
    %1027 = vmatprep.subr.mxu0 0.0
    %1028 = vmatpush1.msra.mxu0 %v1017
    %1029 = vmatprep.subr.mxu0 0.0
    %1030 = vmatpush1.msra.mxu0 %v1016
    %1031 = vmatprep.subr.mxu0 0.0
    %1032 = vmatpush1.msra.mxu0 %v1015
    %1033 = vmatprep.subr.mxu0 0.0
    %1034 = vmatpush1.msra.mxu0 %v1014
    %1035 = vmatprep.subr.mxu0 0.0
    %1036 = vmatpush1.msra.mxu0 %v1013
    %1037 = vmatprep.subr.mxu0 0.0
    %1038 = vmatpush1.msra.mxu0 %v1012
    %1039 = vmatprep.subr.mxu0 0.0
    %1040 = vmatpush1.msra.mxu0 %v1011
    %1041 = vmatprep.subr.mxu0 0.0
    %1042 = vmatpush1.msra.mxu0 %v1010
    %1043 = vmatprep.subr.mxu0 0.0
    %1044 = vmatpush1.msra.mxu0 %v1009
    %1045 = vmatprep.subr.mxu0 0.0
    %1046 = vmatpush1.msra.mxu0 %v1008
    %1047 = vmatprep.subr.mxu0 0.0
    %1048 = vmatpush1.msra.mxu0 %v1007
    %1049 = vmatprep.subr.mxu0 0.0
    %1050 = vmatpush1.msra.mxu0 %v1006
    %1051 = vmatprep.subr.mxu0 0.0
    %1052 = vmatpush1.msra.mxu0 %v1005
    %1053 = vmatprep.subr.mxu0 0.0
    %1054 = vmatpush2.msra.mxu0 0.0
    %1055 = vmatprep.subr.mxu0 0.0
    %1056 = vmatpush2.msra.mxu0 0.0
    %1057 = vmatprep.subr.mxu0 0.0
    %1058 = vmatpush2.msra.mxu0 0.0
    %1059 = vmatprep.subr.mxu0 0.0
    %1060 = vmatpush2.msra.mxu0 0.0
    %1061 = vmatprep.subr.mxu0 0.0
    %1062 = vmatpush2.msra.mxu0 0.0
    %1063 = vmatprep.subr.mxu0 0.0
    %1064 = vmatpush2.msra.mxu0 0.0
    %1065 = vmatprep.subr.mxu0 0.0
    %1066 = vmatpush2.msra.mxu0 0.0
    %1067 = vmatprep.subr.mxu0 0.0
    %1068 = vmatpush2.msra.mxu0 0.0
    %1069 = vmatprep.subr.mxu0 0.0
    %1070 = vmatpush2.msra.mxu0 0.0
    %1071 = vmatprep.subr.mxu0 0.0
    %1072 = vmatpush2.msra.mxu0 0.0
    %1073 = vmatprep.subr.mxu0 0.0
    %1074 = vmatpush2.msra.mxu0 0.0
    %1075 = vmatprep.subr.mxu0 0.0
    %1076 = vmatpush2.msra.mxu0 0.0
    %1077 = vmatprep.subr.mxu0 0.0
    %1078 = vmatpush2.msra.mxu0 0.0
    %1079 = vmatprep.subr.mxu0 0.0
    %1080 = vmatpush2.msra.mxu0 0.0
    %1081 = vmatprep.subr.mxu0 0.0
    %1082 = vmatpush2.msra.mxu0 0.0
    %1083 = vmatprep.subr.mxu0 0.0
    %1084 = vmatpush2.msra.mxu0 0.0
    %1085 = vmatprep.mubr.f32.mxu0 0.0
    %1086 = vmatmul.mubr.f32.gmra.mxu0 %v996
    %v1087 = vpop.f32.mrf.mxu0
    %v1088 = vadd.f32 0.0, %v1087
    %v1089 = vpop.f32.mrf.mxu0
    %1090 = vdwg.mxu0
    %1091 = vmatprep.subr.mxu0 0.0
    %1092 = vmatpush1.msra.mxu0 0.0
    %1093 = vmatprep.subr.mxu0 0.0
    %1094 = vmatpush1.msra.mxu0 0.0
    %1095 = vmatprep.subr.mxu0 0.0
    %1096 = vmatpush1.msra.mxu0 0.0
    %1097 = vmatprep.subr.mxu0 0.0
    %1098 = vmatpush1.msra.mxu0 0.0
    %1099 = vmatprep.subr.mxu0 0.0
    %1100 = vmatpush1.msra.mxu0 0.0
    %1101 = vmatprep.subr.mxu0 0.0
    %1102 = vmatpush1.msra.mxu0 0.0
    %1103 = vmatprep.subr.mxu0 0.0
    %1104 = vmatpush1.msra.mxu0 0.0
    %1105 = vmatprep.subr.mxu0 0.0
    %1106 = vmatpush1.msra.mxu0 0.0
    %1107 = vmatprep.subr.mxu0 0.0
    %1108 = vmatpush1.msra.mxu0 %v1004
    %1109 = vmatprep.subr.mxu0 0.0
    %1110 = vmatpush1.msra.mxu0 %v1003
    %1111 = vmatprep.subr.mxu0 0.0
    %1112 = vmatpush1.msra.mxu0 %v1002
    %1113 = vmatprep.subr.mxu0 0.0
    %1114 = vmatpush1.msra.mxu0 %v1001
    %1115 = vmatprep.subr.mxu0 0.0
    %1116 = vmatpush1.msra.mxu0 %v1000
    %1117 = vmatprep.subr.mxu0 0.0
    %1118 = vmatpush1.msra.mxu0 %v999
    %1119 = vmatprep.subr.mxu0 0.0
    %1120 = vmatpush1.msra.mxu0 %v998
    %1121 = vmatprep.subr.mxu0 0.0
    %1122 = vmatpush1.msra.mxu0 %v997
    %1123 = vmatprep.subr.mxu0 0.0
    %1124 = vmatpush2.msra.mxu0 0.0
    %1125 = vmatprep.subr.mxu0 0.0
    %1126 = vmatpush2.msra.mxu0 0.0
    %1127 = vmatprep.subr.mxu0 0.0
    %1128 = vmatpush2.msra.mxu0 0.0
    %1129 = vmatprep.subr.mxu0 0.0
    %1130 = vmatpush2.msra.mxu0 0.0
    %1131 = vmatprep.subr.mxu0 0.0
    %1132 = vmatpush2.msra.mxu0 0.0
    %1133 = vmatprep.subr.mxu0 0.0
    %1134 = vmatpush2.msra.mxu0 0.0
    %1135 = vmatprep.subr.mxu0 0.0
    %1136 = vmatpush2.msra.mxu0 0.0
    %1137 = vmatprep.subr.mxu0 0.0
    %1138 = vmatpush2.msra.mxu0 0.0
    %1139 = vmatprep.subr.mxu0 0.0
    %1140 = vmatpush2.msra.mxu0 0.0
    %1141 = vmatprep.subr.mxu0 0.0
    %1142 = vmatpush2.msra.mxu0 0.0
    %1143 = vmatprep.subr.mxu0 0.0
    %1144 = vmatpush2.msra.mxu0 0.0
    %1145 = vmatprep.subr.mxu0 0.0
    %1146 = vmatpush2.msra.mxu0 0.0
    %1147 = vmatprep.subr.mxu0 0.0
    %1148 = vmatpush2.msra.mxu0 0.0
    %1149 = vmatprep.subr.mxu0 0.0
    %1150 = vmatpush2.msra.mxu0 0.0
    %1151 = vmatprep.subr.mxu0 0.0
    %1152 = vmatpush2.msra.mxu0 0.0
    %1153 = vmatprep.subr.mxu0 0.0
    %1154 = vmatpush2.msra.mxu0 0.0
    %1155 = vmatprep.mubr.f32.mxu0 0.0
    %1156 = vmatmul.mubr.f32.gmra.mxu0 %v917
    %v1157 = vpop.f32.mrf.mxu0
    %v1158 = vadd.f32 %v1088, %v1157
    %v1159 = vpop.f32.mrf.mxu0
    %1160 = vdwg.mxu0
    %v1161 = vld [vmem:[%s2 + $0x7] sm:$0x1]
    %v1162 = vadd.f32 %v1158, %v1161
    %vm1163 = vcmp.gt.f32.partialorder %v1162, 0.0
    %v1164 = vmin.f32 %v1162, 0.0
    %v1165 = vmul.f32 %v1164, 1.442695
    %v1166 = vpow.pop %v1165
    %v1167 = vsub.f32 %v1166, 1.0
    %v1168 = vsel %vm1163, %v1162, %v1167
    %v1169 = vld [vmem:[#allocation2 + $0x408] sm:$0xff]
    %v1170 = vld [vmem:[#allocation2 + $0x410] sm:$0xff]
    %v1171 = vld [vmem:[#allocation2 + $0x418] sm:$0xff]
    %v1172 = vld [vmem:[#allocation2 + $0x420] sm:$0xff]
    %v1173 = vld [vmem:[#allocation2 + $0x428] sm:$0xff]
    %v1174 = vld [vmem:[#allocation2 + $0x430] sm:$0xff]
    %v1175 = vld [vmem:[#allocation2 + $0x438] sm:$0xff]
    %v1176 = vld [vmem:[#allocation2 + $0x440] sm:$0xff]
    %v1177 = vld [vmem:[#allocation2 + $0x448] sm:$0xff]
    %v1178 = vld [vmem:[#allocation2 + $0x450] sm:$0xff]
    %v1179 = vld [vmem:[#allocation2 + $0x458] sm:$0xff]
    %v1180 = vld [vmem:[#allocation2 + $0x460] sm:$0xff]
    %v1181 = vld [vmem:[#allocation2 + $0x468] sm:$0xff]
    %v1182 = vld [vmem:[#allocation2 + $0x470] sm:$0xff]
    %v1183 = vld [vmem:[#allocation2 + $0x478] sm:$0xff]
    %v1184 = vld [vmem:[#allocation2 + $0x480] sm:$0xff]
    %v1185 = vld [vmem:[#allocation2 + $0x488] sm:$0xff]
    %v1186 = vld [vmem:[#allocation2 + $0x490] sm:$0xff]
    %v1187 = vld [vmem:[#allocation2 + $0x498] sm:$0xff]
    %v1188 = vld [vmem:[#allocation2 + $0x4a0] sm:$0xff]
    %v1189 = vld [vmem:[#allocation2 + $0x4a8] sm:$0xff]
    %v1190 = vld [vmem:[#allocation2 + $0x4b0] sm:$0xff]
    %v1191 = vld [vmem:[#allocation2 + $0x4b8] sm:$0xff]
    %v1192 = vld [vmem:[#allocation2 + $0x4c0] sm:$0xff]
    %1193 = vmatprep.subr.mxu0 0.0
    %1194 = vmatpush1.msra.mxu0 %v1192
    %1195 = vmatprep.subr.mxu0 0.0
    %1196 = vmatpush1.msra.mxu0 %v1191
    %1197 = vmatprep.subr.mxu0 0.0
    %1198 = vmatpush1.msra.mxu0 %v1190
    %1199 = vmatprep.subr.mxu0 0.0
    %1200 = vmatpush1.msra.mxu0 %v1189
    %1201 = vmatprep.subr.mxu0 0.0
    %1202 = vmatpush1.msra.mxu0 %v1188
    %1203 = vmatprep.subr.mxu0 0.0
    %1204 = vmatpush1.msra.mxu0 %v1187
    %1205 = vmatprep.subr.mxu0 0.0
    %1206 = vmatpush1.msra.mxu0 %v1186
    %1207 = vmatprep.subr.mxu0 0.0
    %1208 = vmatpush1.msra.mxu0 %v1185
    %1209 = vmatprep.subr.mxu0 0.0
    %1210 = vmatpush1.msra.mxu0 %v1184
    %1211 = vmatprep.subr.mxu0 0.0
    %1212 = vmatpush1.msra.mxu0 %v1183
    %1213 = vmatprep.subr.mxu0 0.0
    %1214 = vmatpush1.msra.mxu0 %v1182
    %1215 = vmatprep.subr.mxu0 0.0
    %1216 = vmatpush1.msra.mxu0 %v1181
    %1217 = vmatprep.subr.mxu0 0.0
    %1218 = vmatpush1.msra.mxu0 %v1180
    %1219 = vmatprep.subr.mxu0 0.0
    %1220 = vmatpush1.msra.mxu0 %v1179
    %1221 = vmatprep.subr.mxu0 0.0
    %1222 = vmatpush1.msra.mxu0 %v1178
    %1223 = vmatprep.subr.mxu0 0.0
    %1224 = vmatpush1.msra.mxu0 %v1177
    %1225 = vmatprep.subr.mxu0 0.0
    %1226 = vmatpush2.msra.mxu0 0.0
    %1227 = vmatprep.subr.mxu0 0.0
    %1228 = vmatpush2.msra.mxu0 0.0
    %1229 = vmatprep.subr.mxu0 0.0
    %1230 = vmatpush2.msra.mxu0 0.0
    %1231 = vmatprep.subr.mxu0 0.0
    %1232 = vmatpush2.msra.mxu0 0.0
    %1233 = vmatprep.subr.mxu0 0.0
    %1234 = vmatpush2.msra.mxu0 0.0
    %1235 = vmatprep.subr.mxu0 0.0
    %1236 = vmatpush2.msra.mxu0 0.0
    %1237 = vmatprep.subr.mxu0 0.0
    %1238 = vmatpush2.msra.mxu0 0.0
    %1239 = vmatprep.subr.mxu0 0.0
    %1240 = vmatpush2.msra.mxu0 0.0
    %1241 = vmatprep.subr.mxu0 0.0
    %1242 = vmatpush2.msra.mxu0 0.0
    %1243 = vmatprep.subr.mxu0 0.0
    %1244 = vmatpush2.msra.mxu0 0.0
    %1245 = vmatprep.subr.mxu0 0.0
    %1246 = vmatpush2.msra.mxu0 0.0
    %1247 = vmatprep.subr.mxu0 0.0
    %1248 = vmatpush2.msra.mxu0 0.0
    %1249 = vmatprep.subr.mxu0 0.0
    %1250 = vmatpush2.msra.mxu0 0.0
    %1251 = vmatprep.subr.mxu0 0.0
    %1252 = vmatpush2.msra.mxu0 0.0
    %1253 = vmatprep.subr.mxu0 0.0
    %1254 = vmatpush2.msra.mxu0 0.0
    %1255 = vmatprep.subr.mxu0 0.0
    %1256 = vmatpush2.msra.mxu0 0.0
    %1257 = vmatprep.mubr.f32.mxu0 0.0
    %1258 = vmatmul.mubr.f32.gmra.mxu0 %v1168
    %v1259 = vpop.f32.mrf.mxu0
    %v1260 = vadd.f32 0.0, %v1259
    %v1261 = vpop.f32.mrf.mxu0
    %1262 = vdwg.mxu0
    %1263 = vmatprep.subr.mxu0 0.0
    %1264 = vmatpush1.msra.mxu0 0.0
    %1265 = vmatprep.subr.mxu0 0.0
    %1266 = vmatpush1.msra.mxu0 0.0
    %1267 = vmatprep.subr.mxu0 0.0
    %1268 = vmatpush1.msra.mxu0 0.0
    %1269 = vmatprep.subr.mxu0 0.0
    %1270 = vmatpush1.msra.mxu0 0.0
    %1271 = vmatprep.subr.mxu0 0.0
    %1272 = vmatpush1.msra.mxu0 0.0
    %1273 = vmatprep.subr.mxu0 0.0
    %1274 = vmatpush1.msra.mxu0 0.0
    %1275 = vmatprep.subr.mxu0 0.0
    %1276 = vmatpush1.msra.mxu0 0.0
    %1277 = vmatprep.subr.mxu0 0.0
    %1278 = vmatpush1.msra.mxu0 0.0
    %1279 = vmatprep.subr.mxu0 0.0
    %1280 = vmatpush1.msra.mxu0 %v1176
    %1281 = vmatprep.subr.mxu0 0.0
    %1282 = vmatpush1.msra.mxu0 %v1175
    %1283 = vmatprep.subr.mxu0 0.0
    %1284 = vmatpush1.msra.mxu0 %v1174
    %1285 = vmatprep.subr.mxu0 0.0
    %1286 = vmatpush1.msra.mxu0 %v1173
    %1287 = vmatprep.subr.mxu0 0.0
    %1288 = vmatpush1.msra.mxu0 %v1172
    %1289 = vmatprep.subr.mxu0 0.0
    %1290 = vmatpush1.msra.mxu0 %v1171
    %1291 = vmatprep.subr.mxu0 0.0
    %1292 = vmatpush1.msra.mxu0 %v1170
    %1293 = vmatprep.subr.mxu0 0.0
    %1294 = vmatpush1.msra.mxu0 %v1169
    %1295 = vmatprep.subr.mxu0 0.0
    %1296 = vmatpush2.msra.mxu0 0.0
    %1297 = vmatprep.subr.mxu0 0.0
    %1298 = vmatpush2.msra.mxu0 0.0
    %1299 = vmatprep.subr.mxu0 0.0
    %1300 = vmatpush2.msra.mxu0 0.0
    %1301 = vmatprep.subr.mxu0 0.0
    %1302 = vmatpush2.msra.mxu0 0.0
    %1303 = vmatprep.subr.mxu0 0.0
    %1304 = vmatpush2.msra.mxu0 0.0
    %1305 = vmatprep.subr.mxu0 0.0
    %1306 = vmatpush2.msra.mxu0 0.0
    %1307 = vmatprep.subr.mxu0 0.0
    %1308 = vmatpush2.msra.mxu0 0.0
    %1309 = vmatprep.subr.mxu0 0.0
    %1310 = vmatpush2.msra.mxu0 0.0
    %1311 = vmatprep.subr.mxu0 0.0
    %1312 = vmatpush2.msra.mxu0 0.0
    %1313 = vmatprep.subr.mxu0 0.0
    %1314 = vmatpush2.msra.mxu0 0.0
    %1315 = vmatprep.subr.mxu0 0.0
    %1316 = vmatpush2.msra.mxu0 0.0
    %1317 = vmatprep.subr.mxu0 0.0
    %1318 = vmatpush2.msra.mxu0 0.0
    %1319 = vmatprep.subr.mxu0 0.0
    %1320 = vmatpush2.msra.mxu0 0.0
    %1321 = vmatprep.subr.mxu0 0.0
    %1322 = vmatpush2.msra.mxu0 0.0
    %1323 = vmatprep.subr.mxu0 0.0
    %1324 = vmatpush2.msra.mxu0 0.0
    %1325 = vmatprep.subr.mxu0 0.0
    %1326 = vmatpush2.msra.mxu0 0.0
    %1327 = vmatprep.mubr.f32.mxu0 0.0
    %1328 = vmatmul.mubr.f32.gmra.mxu0 %v917
    %v1329 = vpop.f32.mrf.mxu0
    %v1330 = vadd.f32 %v1260, %v1329
    %v1331 = vpop.f32.mrf.mxu0
    %1332 = vdwg.mxu0
    %v1333 = vld [vmem:[%s2 + $0x8] sm:$0x1]
    %v1334 = vadd.f32 %v1330, %v1333
    %vm1335 = vcmp.gt.f32.partialorder %v1334, 0.0
    %v1336 = vmin.f32 %v1334, 0.0
    %v1337 = vmul.f32 %v1336, 1.442695
    %v1338 = vpow.pop %v1337
    %v1339 = vsub.f32 %v1338, 1.0
    %v1340 = vsel %vm1335, %v1334, %v1339
    %v1341 = vld [vmem:[#allocation2 + $0x4c8] sm:$0xff]
    %v1342 = vld [vmem:[#allocation2 + $0x4d0] sm:$0xff]
    %v1343 = vld [vmem:[#allocation2 + $0x4d8] sm:$0xff]
    %v1344 = vld [vmem:[#allocation2 + $0x4e0] sm:$0xff]
    %v1345 = vld [vmem:[#allocation2 + $0x4e8] sm:$0xff]
    %v1346 = vld [vmem:[#allocation2 + $0x4f0] sm:$0xff]
    %v1347 = vld [vmem:[#allocation2 + $0x4f8] sm:$0xff]
    %v1348 = vld [vmem:[#allocation2 + $0x500] sm:$0xff]
    %v1349 = vld [vmem:[#allocation2 + $0x508] sm:$0xff]
    %v1350 = vld [vmem:[#allocation2 + $0x510] sm:$0xff]
    %v1351 = vld [vmem:[#allocation2 + $0x518] sm:$0xff]
    %v1352 = vld [vmem:[#allocation2 + $0x520] sm:$0xff]
    %v1353 = vld [vmem:[#allocation2 + $0x528] sm:$0xff]
    %v1354 = vld [vmem:[#allocation2 + $0x530] sm:$0xff]
    %v1355 = vld [vmem:[#allocation2 + $0x538] sm:$0xff]
    %v1356 = vld [vmem:[#allocation2 + $0x540] sm:$0xff]
    %v1357 = vld [vmem:[#allocation2 + $0x548] sm:$0xff]
    %v1358 = vld [vmem:[#allocation2 + $0x550] sm:$0xff]
    %v1359 = vld [vmem:[#allocation2 + $0x558] sm:$0xff]
    %v1360 = vld [vmem:[#allocation2 + $0x560] sm:$0xff]
    %v1361 = vld [vmem:[#allocation2 + $0x568] sm:$0xff]
    %v1362 = vld [vmem:[#allocation2 + $0x570] sm:$0xff]
    %v1363 = vld [vmem:[#allocation2 + $0x578] sm:$0xff]
    %v1364 = vld [vmem:[#allocation2 + $0x580] sm:$0xff]
    %1365 = vmatprep.subr.mxu0 0.0
    %1366 = vmatpush1.msra.mxu0 %v1364
    %1367 = vmatprep.subr.mxu0 0.0
    %1368 = vmatpush1.msra.mxu0 %v1363
    %1369 = vmatprep.subr.mxu0 0.0
    %1370 = vmatpush1.msra.mxu0 %v1362
    %1371 = vmatprep.subr.mxu0 0.0
    %1372 = vmatpush1.msra.mxu0 %v1361
    %1373 = vmatprep.subr.mxu0 0.0
    %1374 = vmatpush1.msra.mxu0 %v1360
    %1375 = vmatprep.subr.mxu0 0.0
    %1376 = vmatpush1.msra.mxu0 %v1359
    %1377 = vmatprep.subr.mxu0 0.0
    %1378 = vmatpush1.msra.mxu0 %v1358
    %1379 = vmatprep.subr.mxu0 0.0
    %1380 = vmatpush1.msra.mxu0 %v1357
    %1381 = vmatprep.subr.mxu0 0.0
    %1382 = vmatpush1.msra.mxu0 %v1356
    %1383 = vmatprep.subr.mxu0 0.0
    %1384 = vmatpush1.msra.mxu0 %v1355
    %1385 = vmatprep.subr.mxu0 0.0
    %1386 = vmatpush1.msra.mxu0 %v1354
    %1387 = vmatprep.subr.mxu0 0.0
    %1388 = vmatpush1.msra.mxu0 %v1353
    %1389 = vmatprep.subr.mxu0 0.0
    %1390 = vmatpush1.msra.mxu0 %v1352
    %1391 = vmatprep.subr.mxu0 0.0
    %1392 = vmatpush1.msra.mxu0 %v1351
    %1393 = vmatprep.subr.mxu0 0.0
    %1394 = vmatpush1.msra.mxu0 %v1350
    %1395 = vmatprep.subr.mxu0 0.0
    %1396 = vmatpush1.msra.mxu0 %v1349
    %1397 = vmatprep.subr.mxu0 0.0
    %1398 = vmatpush2.msra.mxu0 0.0
    %1399 = vmatprep.subr.mxu0 0.0
    %1400 = vmatpush2.msra.mxu0 0.0
    %1401 = vmatprep.subr.mxu0 0.0
    %1402 = vmatpush2.msra.mxu0 0.0
    %1403 = vmatprep.subr.mxu0 0.0
    %1404 = vmatpush2.msra.mxu0 0.0
    %1405 = vmatprep.subr.mxu0 0.0
    %1406 = vmatpush2.msra.mxu0 0.0
    %1407 = vmatprep.subr.mxu0 0.0
    %1408 = vmatpush2.msra.mxu0 0.0
    %1409 = vmatprep.subr.mxu0 0.0
    %1410 = vmatpush2.msra.mxu0 0.0
    %1411 = vmatprep.subr.mxu0 0.0
    %1412 = vmatpush2.msra.mxu0 0.0
    %1413 = vmatprep.subr.mxu0 0.0
    %1414 = vmatpush2.msra.mxu0 0.0
    %1415 = vmatprep.subr.mxu0 0.0
    %1416 = vmatpush2.msra.mxu0 0.0
    %1417 = vmatprep.subr.mxu0 0.0
    %1418 = vmatpush2.msra.mxu0 0.0
    %1419 = vmatprep.subr.mxu0 0.0
    %1420 = vmatpush2.msra.mxu0 0.0
    %1421 = vmatprep.subr.mxu0 0.0
    %1422 = vmatpush2.msra.mxu0 0.0
    %1423 = vmatprep.subr.mxu0 0.0
    %1424 = vmatpush2.msra.mxu0 0.0
    %1425 = vmatprep.subr.mxu0 0.0
    %1426 = vmatpush2.msra.mxu0 0.0
    %1427 = vmatprep.subr.mxu0 0.0
    %1428 = vmatpush2.msra.mxu0 0.0
    %1429 = vmatprep.mubr.f32.mxu0 0.0
    %1430 = vmatmul.mubr.f32.gmra.mxu0 %v1340
    %v1431 = vpop.f32.mrf.mxu0
    %v1432 = vadd.f32 0.0, %v1431
    %v1433 = vpop.f32.mrf.mxu0
    %1434 = vdwg.mxu0
    %1435 = vmatprep.subr.mxu0 0.0
    %1436 = vmatpush1.msra.mxu0 0.0
    %1437 = vmatprep.subr.mxu0 0.0
    %1438 = vmatpush1.msra.mxu0 0.0
    %1439 = vmatprep.subr.mxu0 0.0
    %1440 = vmatpush1.msra.mxu0 0.0
    %1441 = vmatprep.subr.mxu0 0.0
    %1442 = vmatpush1.msra.mxu0 0.0
    %1443 = vmatprep.subr.mxu0 0.0
    %1444 = vmatpush1.msra.mxu0 0.0
    %1445 = vmatprep.subr.mxu0 0.0
    %1446 = vmatpush1.msra.mxu0 0.0
    %1447 = vmatprep.subr.mxu0 0.0
    %1448 = vmatpush1.msra.mxu0 0.0
    %1449 = vmatprep.subr.mxu0 0.0
    %1450 = vmatpush1.msra.mxu0 0.0
    %1451 = vmatprep.subr.mxu0 0.0
    %1452 = vmatpush1.msra.mxu0 %v1348
    %1453 = vmatprep.subr.mxu0 0.0
    %1454 = vmatpush1.msra.mxu0 %v1347
    %1455 = vmatprep.subr.mxu0 0.0
    %1456 = vmatpush1.msra.mxu0 %v1346
    %1457 = vmatprep.subr.mxu0 0.0
    %1458 = vmatpush1.msra.mxu0 %v1345
    %1459 = vmatprep.subr.mxu0 0.0
    %1460 = vmatpush1.msra.mxu0 %v1344
    %1461 = vmatprep.subr.mxu0 0.0
    %1462 = vmatpush1.msra.mxu0 %v1343
    %1463 = vmatprep.subr.mxu0 0.0
    %1464 = vmatpush1.msra.mxu0 %v1342
    %1465 = vmatprep.subr.mxu0 0.0
    %1466 = vmatpush1.msra.mxu0 %v1341
    %1467 = vmatprep.subr.mxu0 0.0
    %1468 = vmatpush2.msra.mxu0 0.0
    %1469 = vmatprep.subr.mxu0 0.0
    %1470 = vmatpush2.msra.mxu0 0.0
    %1471 = vmatprep.subr.mxu0 0.0
    %1472 = vmatpush2.msra.mxu0 0.0
    %1473 = vmatprep.subr.mxu0 0.0
    %1474 = vmatpush2.msra.mxu0 0.0
    %1475 = vmatprep.subr.mxu0 0.0
    %1476 = vmatpush2.msra.mxu0 0.0
    %1477 = vmatprep.subr.mxu0 0.0
    %1478 = vmatpush2.msra.mxu0 0.0
    %1479 = vmatprep.subr.mxu0 0.0
    %1480 = vmatpush2.msra.mxu0 0.0
    %1481 = vmatprep.subr.mxu0 0.0
    %1482 = vmatpush2.msra.mxu0 0.0
    %1483 = vmatprep.subr.mxu0 0.0
    %1484 = vmatpush2.msra.mxu0 0.0
    %1485 = vmatprep.subr.mxu0 0.0
    %1486 = vmatpush2.msra.mxu0 0.0
    %1487 = vmatprep.subr.mxu0 0.0
    %1488 = vmatpush2.msra.mxu0 0.0
    %1489 = vmatprep.subr.mxu0 0.0
    %1490 = vmatpush2.msra.mxu0 0.0
    %1491 = vmatprep.subr.mxu0 0.0
    %1492 = vmatpush2.msra.mxu0 0.0
    %1493 = vmatprep.subr.mxu0 0.0
    %1494 = vmatpush2.msra.mxu0 0.0
    %1495 = vmatprep.subr.mxu0 0.0
    %1496 = vmatpush2.msra.mxu0 0.0
    %1497 = vmatprep.subr.mxu0 0.0
    %1498 = vmatpush2.msra.mxu0 0.0
    %1499 = vmatprep.mubr.f32.mxu0 0.0
    %1500 = vmatmul.mubr.f32.gmra.mxu0 %v917
    %v1501 = vpop.f32.mrf.mxu0
    %v1502 = vadd.f32 %v1432, %v1501
    %v1503 = vpop.f32.mrf.mxu0
    %1504 = vdwg.mxu0
    %v1505 = vld [vmem:[%s2 + $0x9] sm:$0x1]
    %v1506 = vadd.f32 %v1502, %v1505
    %v1507 = vmul.f32 %v820, 0.3
    %1509 = vrot.lane.b32.xlu0 %v1507, 80
    %v1510 = vpop.permute.xlu0 %1509
    %v1512 = vadd.f32 %v1506, %v1510
    %1514 = vrot.lane.b32.xlu0 %v1506, 16
    %v1515 = vpop.permute.xlu0 %1514
    %v1517 = vadd.f32 %v1512, %v1515
    %1519 = vrot.lane.b32.xlu0 %v1517, 112
    %v1520 = vpop.permute.xlu0 %1519
    %vm1522 = vcmask 122880
    %1523 = vst.msk [vmem:[%s3] sm:$0x1] %vm1522, %v1520
    %1524 = vrot.lane.b32.xlu0 %v1506, 112
    %v1525 = vpop.permute.xlu0 %1524
    %v1527 = vadd.f32 %v1506, %v1525
    %1528 = vst.msk [vmem:[%s3 + $0x1] sm:$0x1] %vm1522, %v1527
    %1529 = vst.msk [vmem:[%s3 + $0x2] sm:$0x1] %vm1522, %v1506
    // Predicated region
    $region18: #{_forward_impl.1} parent=1 // pred_check
      _
    $region19: #{_forward_impl.1} parent=1 // pred_check_branch
      %1531 = sbr.rel (0) target = $region21
    $region20: #{_forward_impl.1} parent=1 // pred_region
      _
    $region21: #{_forward_impl.1} parent=1 // pred_fallthru
      _
    // Predicated region
    $region22: #{_forward_impl.1} parent=1 // pred_check
      _
    $region23: #{_forward_impl.1} parent=1 // pred_check_branch
      %1533 = sbr.rel (0) target = $region25
    $region24: #{_forward_impl.1} parent=1 // pred_region
      _
    $region25: #{_forward_impl.1} parent=1 // pred_fallthru
      _
    %1534 = vsyncpa [#allocation3], 1

</llo_original>
